<compile_context>
chip_gen: v6e
topology: v6e:2x2x1
jax: 0.10.0
libtpu: 0.0.40
codegen_flags: <defaults>
</compile_context>

<pallas_src>
import functools

import jax
import jax.numpy as jnp
from jax.experimental import pallas as pl
from jax.experimental.pallas import tpu as pltpu

IN_DIM = 2500
HID_DIM = 64
OUT_DIM = 4
OUT_PAD = 8          # small lane-padded logits block; real logits live in cols [:4]


def _round_up(n: int, m: int) -> int:
    return ((n + m - 1) // m) * m


def policy_kernel(x_ref, w1_ref, b1_ref, w2_ref, b2_ref, o_ref):
    # fc1: cast the streamed f32 x tile to bf16 in VMEM, bf16 x bf16 MXU matmul
    # with f32 accumulation; bias + ReLU on the VPU.
    x = x_ref[...].astype(jnp.bfloat16)                               # (TB, 2500)
    h = jnp.dot(x, w1_ref[...], preferred_element_type=jnp.float32)   # (TB, 64)
    h = jnp.maximum(h + b1_ref[...], 0.0)
    # fc3: tiny f32 matmul into an 8-lane block (cols >= 4 are zero).
    out = jnp.dot(h, w2_ref[...], preferred_element_type=jnp.float32)  # (TB, 8)
    o_ref[...] = (out + b2_ref[...]).astype(o_ref.dtype)


@functools.partial(jax.jit, static_argnames=("tb",))
def policy_net_forward(x, w1, b1, w2, b2, *, tb=1024):
    """x: (B, 2500) f32, w1: (2500, 64), b1: (1, 64), w2: (64, 4), b2: (1, 4).

    Weights are stored transposed vs torch (in_features, out_features).
    Returns (B, 4) f32.
    """
    B = x.shape[0]
    tb_eff = _round_up(min(tb, B), 16)        # block rows, multiple of 16
    grid = (pl.cdiv(B, tb_eff),)              # ragged last block handled by Pallas

    # Tiny one-time weight prep (0.3 MiB total; x itself is never copied).
    w1_bf = w1.astype(jnp.bfloat16)
    w2_p = jnp.pad(w2, ((0, 0), (0, OUT_PAD - OUT_DIM)))
    b2_p = jnp.pad(b2, ((0, 0), (0, OUT_PAD - OUT_DIM)))

    # Explicit scoped-VMEM budget: f32 x double-buffer + in-kernel bf16 copy of
    # the tile + resident weights + double-buffered out block + temporaries.
    est = (2 * tb_eff * IN_DIM * 4            # x (f32) double buffer
           + tb_eff * IN_DIM * 2              # bf16 copy of the x tile
           + 2 * IN_DIM * HID_DIM * 2         # resident W1 (bf16)
           + 2 * tb_eff * OUT_PAD * 4         # out double buffer
           + 4 * tb_eff * HID_DIM * 4)        # h / small temporaries
    vmem_limit = int(min(max(est * 3 // 2 + (4 << 20), 16 << 20), 96 << 20))

    out_padded = pl.pallas_call(
        policy_kernel,
        out_shape=jax.ShapeDtypeStruct((B, OUT_PAD), jnp.float32),
        grid_spec=pltpu.PrefetchScalarGridSpec(
            num_scalar_prefetch=0,
            grid=grid,
            in_specs=[
                pl.BlockSpec((tb_eff, IN_DIM), lambda i: (i, 0)),     # x streams (f32)
                pl.BlockSpec((IN_DIM, HID_DIM), lambda i: (0, 0)),    # W1 resident
                pl.BlockSpec((1, HID_DIM), lambda i: (0, 0)),         # b1 resident
                pl.BlockSpec((HID_DIM, OUT_PAD), lambda i: (0, 0)),   # W2 resident
                pl.BlockSpec((1, OUT_PAD), lambda i: (0, 0)),         # b2 resident
            ],
            out_specs=pl.BlockSpec((tb_eff, OUT_PAD), lambda i: (i, 0)),
        ),
        compiler_params=pltpu.CompilerParams(
            dimension_semantics=("parallel",),   # shard batch tiles across v7x TCs
            vmem_limit_bytes=vmem_limit,
        ),
    )(x, w1_bf, b1, w2_p, b2_p)

    return out_padded[:, :OUT_DIM]


def init_params(key):
    """Deterministic init matching torch nn.Linear default (uniform +-1/sqrt(fan_in))."""
    k1, k2, k3, k4 = jax.random.split(key, 4)
    bound1 = 1.0 / jnp.sqrt(IN_DIM)
    bound2 = 1.0 / jnp.sqrt(HID_DIM)
    # stored as (in_features, out_features) == transpose of torch's weight layout
    w1 = jax.random.uniform(k1, (IN_DIM, HID_DIM), jnp.float32, -bound1, bound1)
    b1 = jax.random.uniform(k2, (1, HID_DIM), jnp.float32, -bound1, bound1)
    w2 = jax.random.uniform(k3, (HID_DIM, OUT_DIM), jnp.float32, -bound2, bound2)
    b2 = jax.random.uniform(k4, (1, OUT_DIM), jnp.float32, -bound2, bound2)
    return w1, b1, w2, b2


def _check(out, x, w1, b1, w2, b2):
    # Reference with the same bf16 rounding of x/W1 (fc1 accumulates in f32).
    xb = x.astype(jnp.bfloat16).astype(jnp.float32)
    w1b = w1.astype(jnp.bfloat16).astype(jnp.float32)
    ref_bf16 = jnp.maximum(xb @ w1b + b1, 0.0) @ w2 + b2
    assert jnp.allclose(out, ref_bf16, atol=1e-3, rtol=1e-3)
    # Loose sanity check vs the pure-f32 forward (bf16 fc1 perturbs numerics slightly).
    ref_f32 = jnp.maximum(x @ w1 + b1, 0.0) @ w2 + b2
    assert jnp.allclose(out, ref_f32, atol=5e-2, rtol=5e-2)


if __name__ == "__main__":
    key = jax.random.PRNGKey(0)
    kx, kp = jax.random.split(key)
    w1, b1, w2, b2 = init_params(kp)

    # Case 1: tiny batch, not a multiple of 16 -> single ragged block.
    B1 = 6
    x1 = jax.random.normal(kx, (B1, IN_DIM), jnp.float32)
    out1 = jax.block_until_ready(policy_net_forward(x1, w1, b1, w2, b2))
    assert out1.shape == (B1, OUT_DIM)
    _check(out1, x1, w1, b1, w2, b2)

    # Case 2: multiple tiles with a ragged last block (B=40, tb=16 -> grid=3).
    B2 = 40
    x2 = jax.random.normal(jax.random.fold_in(kx, 1), (B2, IN_DIM), jnp.float32)
    out2 = jax.block_until_ready(policy_net_forward(x2, w1, b1, w2, b2, tb=16))
    assert out2.shape == (B2, OUT_DIM)
    _check(out2, x2, w1, b1, w2, b2)

    print("KERNEL_OK")
</pallas_src>

<mosaic_0001>
module attributes {stable_mosaic.version = 11 : i64} {
  func.func @policy_kernel(%arg0: i32, %arg1: memref<16x2500xf32, #tpu.memory_space<vmem>>, %arg2: memref<2500x64xbf16, #tpu.memory_space<vmem>>, %arg3: memref<1x64xf32, #tpu.memory_space<vmem>>, %arg4: memref<64x8xf32, #tpu.memory_space<vmem>>, %arg5: memref<1x8xf32, #tpu.memory_space<vmem>>, %arg6: memref<16x8xf32, #tpu.memory_space<vmem>>) attributes {dimension_semantics = [#tpu.dimension_semantics<parallel>], iteration_bounds = array<i64: 1>, scalar_prefetch = 0 : i64, scratch_operands = 0 : i64, tpu.core_type = #tpu.core_type<tc>, window_params = [{transform_indices = @transform_0, window_bounds = array<i64: 16, 2500>}, {pipeline_mode = #tpu.pipeline_mode<synchronous>, transform_indices = @transform_1, window_bounds = array<i64: 2500, 64>}, {pipeline_mode = #tpu.pipeline_mode<synchronous>, transform_indices = @transform_2, window_bounds = array<i64: 1, 64>}, {pipeline_mode = #tpu.pipeline_mode<synchronous>, transform_indices = @transform_3, window_bounds = array<i64: 64, 8>}, {pipeline_mode = #tpu.pipeline_mode<synchronous>, transform_indices = @transform_4, window_bounds = array<i64: 1, 8>}, {transform_indices = @transform_5, window_bounds = array<i64: 16, 8>}]} {
    %c0 = arith.constant 0 : index
    %c0_0 = arith.constant 0 : index
    %0 = vector.load %arg1[%c0, %c0_0] : memref<16x2500xf32, #tpu.memory_space<vmem>>, vector<16x2500xf32>
    %1 = arith.truncf %0 : vector<16x2500xf32> to vector<16x2500xbf16>
    %c0_1 = arith.constant 0 : index
    %c0_2 = arith.constant 0 : index
    %2 = vector.load %arg2[%c0_1, %c0_2] : memref<2500x64xbf16, #tpu.memory_space<vmem>>, vector<2500x64xbf16>
    %cst = arith.constant dense<0.000000e+00> : vector<16x64xf32>
    %3 = tpu.matmul %1, %2, %cst {dimension_numbers = #tpu.dot_dimension_numbers<[1], [0], [0], [1], [0, 0, 1, 1], [], []>} : vector<16x2500xbf16>, vector<2500x64xbf16>, vector<16x64xf32> -> vector<16x64xf32>
    %c0_3 = arith.constant 0 : index
    %c0_4 = arith.constant 0 : index
    %4 = vector.load %arg3[%c0_3, %c0_4] : memref<1x64xf32, #tpu.memory_space<vmem>>, vector<1x64xf32>
    %5 = vector.broadcast %4 : vector<1x64xf32> to vector<16x64xf32>
    %6 = arith.addf %3, %5 : vector<16x64xf32>
    %cst_5 = arith.constant 0.000000e+00 : f32
    %7 = vector.broadcast %cst_5 : f32 to vector<16x64xf32>
    %8 = arith.maximumf %6, %7 : vector<16x64xf32>
    %c0_6 = arith.constant 0 : index
    %c0_7 = arith.constant 0 : index
    %9 = vector.load %arg4[%c0_6, %c0_7] : memref<64x8xf32, #tpu.memory_space<vmem>>, vector<64x8xf32>
    %cst_8 = arith.constant dense<0.000000e+00> : vector<16x8xf32>
    %10 = tpu.matmul %8, %9, %cst_8 {dimension_numbers = #tpu.dot_dimension_numbers<[1], [0], [0], [1], [0, 0, 1, 1], [], []>} : vector<16x64xf32>, vector<64x8xf32>, vector<16x8xf32> -> vector<16x8xf32>
    %c0_9 = arith.constant 0 : index
    %c0_10 = arith.constant 0 : index
    %11 = vector.load %arg5[%c0_9, %c0_10] : memref<1x8xf32, #tpu.memory_space<vmem>>, vector<1x8xf32>
    %12 = vector.broadcast %11 : vector<1x8xf32> to vector<16x8xf32>
    %13 = arith.addf %10, %12 : vector<16x8xf32>
    %c0_11 = arith.constant 0 : index
    %c0_12 = arith.constant 0 : index
    %14 = vector.load %arg6[%c0_11, %c0_12] : memref<16x8xf32, #tpu.memory_space<vmem>>, vector<16x8xf32>
    tpu.vector_store %arg6[%c0_11, %c0_12], %13 {strides = array<i32>} : memref<16x8xf32, #tpu.memory_space<vmem>>, vector<16x8xf32>,
    return
  }
  func.func @transform_0(%arg0: i32) -> (i32, i32) {
    %c0_i32 = arith.constant 0 : i32
    %c0_i32_0 = arith.constant 0 : i32
    return %arg0, %c0_i32 : i32, i32
  }
  func.func @transform_1(%arg0: i32) -> (i32, i32) {
    %c0_i32 = arith.constant 0 : i32
    %c0_i32_0 = arith.constant 0 : i32
    %c0_i32_1 = arith.constant 0 : i32
    return %c0_i32, %c0_i32_0 : i32, i32
  }
  func.func @transform_2(%arg0: i32) -> (i32, i32) {
    %c0_i32 = arith.constant 0 : i32
    %c0_i32_0 = arith.constant 0 : i32
    %c0_i32_1 = arith.constant 0 : i32
    return %c0_i32, %c0_i32_0 : i32, i32
  }
  func.func @transform_3(%arg0: i32) -> (i32, i32) {
    %c0_i32 = arith.constant 0 : i32
    %c0_i32_0 = arith.constant 0 : i32
    %c0_i32_1 = arith.constant 0 : i32
    return %c0_i32, %c0_i32_0 : i32, i32
  }
  func.func @transform_4(%arg0: i32) -> (i32, i32) {
    %c0_i32 = arith.constant 0 : i32
    %c0_i32_0 = arith.constant 0 : i32
    %c0_i32_1 = arith.constant 0 : i32
    return %c0_i32, %c0_i32_0 : i32, i32
  }
  func.func @transform_5(%arg0: i32) -> (i32, i32) {
    %c0_i32 = arith.constant 0 : i32
    %c0_i32_0 = arith.constant 0 : i32
    return %arg0, %c0_i32 : i32, i32
  }
}

</mosaic_0001>

<llo_original>
// kernel: policy_net_forward.1
$region0: #{policy_net_forward.1}
  #allocation0 [shape = 'u32[]', space=smem, size = 0x4, offset = 0x4, fixed_abs, tag = 'smem constant byte address 0x4 - core index']
  #allocation1 [shape = 'u32[144,128]{1,0:T(1,128)}', space=vmem, size = 0x12000, scoped, tag = 'internal scratch']
  %s0 = inlined_call_operand.vmem [shape: f32[6,2500], index: 0, kind: input, shape index: {}]
  %s1 = inlined_call_operand.vmem [shape: bf16[2500,64], index: 1, kind: input, shape index: {}]
  %s2 = inlined_call_operand.vmem [shape: f32[1,64], index: 2, kind: input, shape index: {}]
  %s3 = inlined_call_operand.vmem [shape: f32[64,8], index: 3, kind: input, shape index: {}]
  %s4 = inlined_call_operand.vmem [shape: f32[1,8], index: 4, kind: input, shape index: {}]
  %s5 = inlined_call_operand.vmem [shape: f32[6,8], index: 5, kind: output, shape index: {}]
  %s6 = sld [smem:[#allocation0]]
  $region64: #{policy_net_forward.1} parent=0
    _
  %s8 = ssub.s32 1, %s6
  %s9 = scalar_select 0, %s8, %s6
  $region1: #{policy_net_forward.1} parent=0
    #allocation2 [shape = 'u8[8192]{0}', space=vmem, size = 0x2000, scoped, tag = 'output window, operand 0, single buffered']
    // Predicated region
    $region2: #{policy_net_forward.1} parent=1 // pred_check
      _
    $region3: #{policy_net_forward.1} parent=1 // pred_check_branch
      %11 = sbr.rel (0) target = $region5
    $region4: #{policy_net_forward.1} parent=1 // pred_region
      _
    $region5: #{policy_net_forward.1} parent=1 // pred_fallthru
      _
    // Predicated region
    $region6: #{policy_net_forward.1} parent=1 // pred_check
      _
    $region7: #{policy_net_forward.1} parent=1 // pred_check_branch
      %13 = sbr.rel (0) target = $region9
    $region8: #{policy_net_forward.1} parent=1 // pred_region
      _
    $region9: #{policy_net_forward.1} parent=1 // pred_fallthru
      _
    // Predicated region
    $region10: #{policy_net_forward.1} parent=1 // pred_check
      _
    $region11: #{policy_net_forward.1} parent=1 // pred_check_branch
      %15 = sbr.rel (0) target = $region13
    $region12: #{policy_net_forward.1} parent=1 // pred_region
      _
    $region13: #{policy_net_forward.1} parent=1 // pred_fallthru
      _
    // Predicated region
    $region14: #{policy_net_forward.1} parent=1 // pred_check
      _
    $region15: #{policy_net_forward.1} parent=1 // pred_check_branch
      %17 = sbr.rel (0) target = $region17
    $region16: #{policy_net_forward.1} parent=1 // pred_region
      _
    $region17: #{policy_net_forward.1} parent=1 // pred_fallthru
      _
    // Predicated region
    $region18: #{policy_net_forward.1} parent=1 // pred_check
      _
    $region19: #{policy_net_forward.1} parent=1 // pred_check_branch
      %19 = sbr.rel (0) target = $region21
    $region20: #{policy_net_forward.1} parent=1 // pred_region
      _
    $region21: #{policy_net_forward.1} parent=1 // pred_fallthru
      _
    %v21 = vld [vmem:[%s0] sm:$0xff]
    %v22 = vld [vmem:[%s0 + $0x8] sm:$0xff]
    %v23 = vld [vmem:[%s0 + $0x10] sm:$0xff]
    %v24 = vld [vmem:[%s0 + $0x18] sm:$0xff]
    %v25 = vld [vmem:[%s0 + $0x20] sm:$0xff]
    %v26 = vld [vmem:[%s0 + $0x28] sm:$0xff]
    %v27 = vld [vmem:[%s0 + $0x30] sm:$0xff]
    %v28 = vld [vmem:[%s0 + $0x38] sm:$0xff]
    %v29 = vld [vmem:[%s0 + $0x40] sm:$0xff]
    %v30 = vld [vmem:[%s0 + $0x48] sm:$0xff]
    %v31 = vld [vmem:[%s0 + $0x50] sm:$0xff]
    %v32 = vld [vmem:[%s0 + $0x58] sm:$0xff]
    %v33 = vld [vmem:[%s0 + $0x60] sm:$0xff]
    %v34 = vld [vmem:[%s0 + $0x68] sm:$0xff]
    %v35 = vld [vmem:[%s0 + $0x70] sm:$0xff]
    %v36 = vld [vmem:[%s0 + $0x78] sm:$0xff]
    %v37 = vld [vmem:[%s0 + $0x80] sm:$0xff]
    %v38 = vld [vmem:[%s0 + $0x88] sm:$0xff]
    %v39 = vld [vmem:[%s0 + $0x90] sm:$0xff]
    %v40 = vld [vmem:[%s0 + $0x98] sm:$0xff]
    %v41 = vld [vmem:[%s0 + $0xa0] sm:$0xff]
    %v42 = vld [vmem:[%s0 + $0xa8] sm:$0xff]
    %v43 = vld [vmem:[%s0 + $0xb0] sm:$0xff]
    %v44 = vld [vmem:[%s0 + $0xb8] sm:$0xff]
    %v45 = vld [vmem:[%s0 + $0xc0] sm:$0xff]
    %v46 = vld [vmem:[%s0 + $0xc8] sm:$0xff]
    %v47 = vld [vmem:[%s0 + $0xd0] sm:$0xff]
    %v48 = vld [vmem:[%s0 + $0xd8] sm:$0xff]
    %v49 = vld [vmem:[%s0 + $0xe0] sm:$0xff]
    %v50 = vld [vmem:[%s0 + $0xe8] sm:$0xff]
    %v51 = vld [vmem:[%s0 + $0xf0] sm:$0xff]
    %v52 = vld [vmem:[%s0 + $0xf8] sm:$0xff]
    %v53 = vld [vmem:[%s0 + $0x100] sm:$0xff]
    %v54 = vld [vmem:[%s0 + $0x108] sm:$0xff]
    %v55 = vld [vmem:[%s0 + $0x110] sm:$0xff]
    %v56 = vld [vmem:[%s0 + $0x118] sm:$0xff]
    %v57 = vld [vmem:[%s0 + $0x120] sm:$0xff]
    %v58 = vld [vmem:[%s0 + $0x128] sm:$0xff]
    %v59 = vld [vmem:[%s0 + $0x130] sm:$0xff]
    %v60 = vld [vmem:[%s0 + $0x138] sm:$0xff]
    %v61 = vpack.c.bf16 %v41, %v21
    %v62 = vpack.c.bf16 %v42, %v22
    %v63 = vpack.c.bf16 %v43, %v23
    %v64 = vpack.c.bf16 %v44, %v24
    %v65 = vpack.c.bf16 %v45, %v25
    %v66 = vpack.c.bf16 %v46, %v26
    %v67 = vpack.c.bf16 %v47, %v27
    %v68 = vpack.c.bf16 %v48, %v28
    %v69 = vpack.c.bf16 %v49, %v29
    %v70 = vpack.c.bf16 %v50, %v30
    %v71 = vpack.c.bf16 %v51, %v31
    %v72 = vpack.c.bf16 %v52, %v32
    %v73 = vpack.c.bf16 %v53, %v33
    %v74 = vpack.c.bf16 %v54, %v34
    %v75 = vpack.c.bf16 %v55, %v35
    %v76 = vpack.c.bf16 %v56, %v36
    %v77 = vpack.c.bf16 %v57, %v37
    %v78 = vpack.c.bf16 %v58, %v38
    %v79 = vpack.c.bf16 %v59, %v39
    %v80 = vpack.c.bf16 %v60, %v40
    %v81 = vld [vmem:[%s1] sm:$0xf]
    %v82 = vld [vmem:[%s1 + $0x4] sm:$0xf]
    %v83 = vld [vmem:[%s1 + $0x8] sm:$0xf]
    %v84 = vld [vmem:[%s1 + $0xc] sm:$0xf]
    %v85 = vld [vmem:[%s1 + $0x10] sm:$0xf]
    %v86 = vld [vmem:[%s1 + $0x14] sm:$0xf]
    %v87 = vld [vmem:[%s1 + $0x18] sm:$0xf]
    %v88 = vld [vmem:[%s1 + $0x1c] sm:$0xf]
    %v89 = vld [vmem:[%s1 + $0x20] sm:$0xf]
    %v90 = vld [vmem:[%s1 + $0x24] sm:$0xf]
    %v91 = vld [vmem:[%s1 + $0x28] sm:$0xf]
    %v92 = vld [vmem:[%s1 + $0x2c] sm:$0xf]
    %v93 = vld [vmem:[%s1 + $0x30] sm:$0xf]
    %v94 = vld [vmem:[%s1 + $0x34] sm:$0xf]
    %v95 = vld [vmem:[%s1 + $0x38] sm:$0xf]
    %v96 = vld [vmem:[%s1 + $0x3c] sm:$0xf]
    %v97 = vld [vmem:[%s1 + $0x40] sm:$0xf]
    %v98 = vld [vmem:[%s1 + $0x44] sm:$0xf]
    %v99 = vld [vmem:[%s1 + $0x48] sm:$0xf]
    %v100 = vld [vmem:[%s1 + $0x4c] sm:$0xf]
    %v101 = vld [vmem:[%s1 + $0x50] sm:$0xf]
    %v102 = vld [vmem:[%s1 + $0x54] sm:$0xf]
    %v103 = vld [vmem:[%s1 + $0x58] sm:$0xf]
    %v104 = vld [vmem:[%s1 + $0x5c] sm:$0xf]
    %v105 = vld [vmem:[%s1 + $0x60] sm:$0xf]
    %v106 = vld [vmem:[%s1 + $0x64] sm:$0xf]
    %v107 = vld [vmem:[%s1 + $0x68] sm:$0xf]
    %v108 = vld [vmem:[%s1 + $0x6c] sm:$0xf]
    %v109 = vld [vmem:[%s1 + $0x70] sm:$0xf]
    %v110 = vld [vmem:[%s1 + $0x74] sm:$0xf]
    %v111 = vld [vmem:[%s1 + $0x78] sm:$0xf]
    %v112 = vld [vmem:[%s1 + $0x7c] sm:$0xf]
    %v113 = vld [vmem:[%s1 + $0x80] sm:$0xf]
    %v114 = vld [vmem:[%s1 + $0x84] sm:$0xf]
    %v115 = vld [vmem:[%s1 + $0x88] sm:$0xf]
    %v116 = vld [vmem:[%s1 + $0x8c] sm:$0xf]
    %v117 = vld [vmem:[%s1 + $0x90] sm:$0xf]
    %v118 = vld [vmem:[%s1 + $0x94] sm:$0xf]
    %v119 = vld [vmem:[%s1 + $0x98] sm:$0xf]
    %v120 = vld [vmem:[%s1 + $0x9c] sm:$0xf]
    %v121 = vld [vmem:[%s1 + $0xa0] sm:$0xf]
    %v122 = vld [vmem:[%s1 + $0xa4] sm:$0xf]
    %v123 = vld [vmem:[%s1 + $0xa8] sm:$0xf]
    %v124 = vld [vmem:[%s1 + $0xac] sm:$0xf]
    %v125 = vld [vmem:[%s1 + $0xb0] sm:$0xf]
    %v126 = vld [vmem:[%s1 + $0xb4] sm:$0xf]
    %v127 = vld [vmem:[%s1 + $0xb8] sm:$0xf]
    %v128 = vld [vmem:[%s1 + $0xbc] sm:$0xf]
    %v129 = vld [vmem:[%s1 + $0xc0] sm:$0xf]
    %v130 = vld [vmem:[%s1 + $0xc4] sm:$0xf]
    %v131 = vld [vmem:[%s1 + $0xc8] sm:$0xf]
    %v132 = vld [vmem:[%s1 + $0xcc] sm:$0xf]
    %v133 = vld [vmem:[%s1 + $0xd0] sm:$0xf]
    %v134 = vld [vmem:[%s1 + $0xd4] sm:$0xf]
    %v135 = vld [vmem:[%s1 + $0xd8] sm:$0xf]
    %v136 = vld [vmem:[%s1 + $0xdc] sm:$0xf]
    %v137 = vld [vmem:[%s1 + $0xe0] sm:$0xf]
    %v138 = vld [vmem:[%s1 + $0xe4] sm:$0xf]
    %v139 = vld [vmem:[%s1 + $0xe8] sm:$0xf]
    %v140 = vld [vmem:[%s1 + $0xec] sm:$0xf]
    %v141 = vld [vmem:[%s1 + $0xf0] sm:$0xf]
    %v142 = vld [vmem:[%s1 + $0xf4] sm:$0xf]
    %v143 = vld [vmem:[%s1 + $0xf8] sm:$0xf]
    %v144 = vld [vmem:[%s1 + $0xfc] sm:$0xf]
    %v145 = vld [vmem:[%s1 + $0x100] sm:$0xf]
    %v146 = vld [vmem:[%s1 + $0x104] sm:$0xf]
    %v147 = vld [vmem:[%s1 + $0x108] sm:$0xf]
    %v148 = vld [vmem:[%s1 + $0x10c] sm:$0xf]
    %v149 = vld [vmem:[%s1 + $0x110] sm:$0xf]
    %v150 = vld [vmem:[%s1 + $0x114] sm:$0xf]
    %v151 = vld [vmem:[%s1 + $0x118] sm:$0xf]
    %v152 = vld [vmem:[%s1 + $0x11c] sm:$0xf]
    %v153 = vld [vmem:[%s1 + $0x120] sm:$0xf]
    %v154 = vld [vmem:[%s1 + $0x124] sm:$0xf]
    %v155 = vld [vmem:[%s1 + $0x128] sm:$0xf]
    %v156 = vld [vmem:[%s1 + $0x12c] sm:$0xf]
    %v157 = vld [vmem:[%s1 + $0x130] sm:$0xf]
    %v158 = vld [vmem:[%s1 + $0x134] sm:$0xf]
    %v159 = vld [vmem:[%s1 + $0x138] sm:$0xf]
    %v160 = vld [vmem:[%s1 + $0x13c] sm:$0xf]
    %v161 = vld [vmem:[%s1 + $0x140] sm:$0xf]
    %v162 = vld [vmem:[%s1 + $0x144] sm:$0xf]
    %v163 = vld [vmem:[%s1 + $0x148] sm:$0xf]
    %v164 = vld [vmem:[%s1 + $0x14c] sm:$0xf]
    %v165 = vld [vmem:[%s1 + $0x150] sm:$0xf]
    %v166 = vld [vmem:[%s1 + $0x154] sm:$0xf]
    %v167 = vld [vmem:[%s1 + $0x158] sm:$0xf]
    %v168 = vld [vmem:[%s1 + $0x15c] sm:$0xf]
    %v169 = vld [vmem:[%s1 + $0x160] sm:$0xf]
    %v170 = vld [vmem:[%s1 + $0x164] sm:$0xf]
    %v171 = vld [vmem:[%s1 + $0x168] sm:$0xf]
    %v172 = vld [vmem:[%s1 + $0x16c] sm:$0xf]
    %v173 = vld [vmem:[%s1 + $0x170] sm:$0xf]
    %v174 = vld [vmem:[%s1 + $0x174] sm:$0xf]
    %v175 = vld [vmem:[%s1 + $0x178] sm:$0xf]
    %v176 = vld [vmem:[%s1 + $0x17c] sm:$0xf]
    %v177 = vld [vmem:[%s1 + $0x180] sm:$0xf]
    %v178 = vld [vmem:[%s1 + $0x184] sm:$0xf]
    %v179 = vld [vmem:[%s1 + $0x188] sm:$0xf]
    %v180 = vld [vmem:[%s1 + $0x18c] sm:$0xf]
    %v181 = vld [vmem:[%s1 + $0x190] sm:$0xf]
    %v182 = vld [vmem:[%s1 + $0x194] sm:$0xf]
    %v183 = vld [vmem:[%s1 + $0x198] sm:$0xf]
    %v184 = vld [vmem:[%s1 + $0x19c] sm:$0xf]
    %v185 = vld [vmem:[%s1 + $0x1a0] sm:$0xf]
    %v186 = vld [vmem:[%s1 + $0x1a4] sm:$0xf]
    %v187 = vld [vmem:[%s1 + $0x1a8] sm:$0xf]
    %v188 = vld [vmem:[%s1 + $0x1ac] sm:$0xf]
    %v189 = vld [vmem:[%s1 + $0x1b0] sm:$0xf]
    %v190 = vld [vmem:[%s1 + $0x1b4] sm:$0xf]
    %v191 = vld [vmem:[%s1 + $0x1b8] sm:$0xf]
    %v192 = vld [vmem:[%s1 + $0x1bc] sm:$0xf]
    %v193 = vld [vmem:[%s1 + $0x1c0] sm:$0xf]
    %v194 = vld [vmem:[%s1 + $0x1c4] sm:$0xf]
    %v195 = vld [vmem:[%s1 + $0x1c8] sm:$0xf]
    %v196 = vld [vmem:[%s1 + $0x1cc] sm:$0xf]
    %v197 = vld [vmem:[%s1 + $0x1d0] sm:$0xf]
    %v198 = vld [vmem:[%s1 + $0x1d4] sm:$0xf]
    %v199 = vld [vmem:[%s1 + $0x1d8] sm:$0xf]
    %v200 = vld [vmem:[%s1 + $0x1dc] sm:$0xf]
    %v201 = vld [vmem:[%s1 + $0x1e0] sm:$0xf]
    %v202 = vld [vmem:[%s1 + $0x1e4] sm:$0xf]
    %v203 = vld [vmem:[%s1 + $0x1e8] sm:$0xf]
    %v204 = vld [vmem:[%s1 + $0x1ec] sm:$0xf]
    %v205 = vld [vmem:[%s1 + $0x1f0] sm:$0xf]
    %v206 = vld [vmem:[%s1 + $0x1f4] sm:$0xf]
    %v207 = vld [vmem:[%s1 + $0x1f8] sm:$0xf]
    %v208 = vld [vmem:[%s1 + $0x1fc] sm:$0xf]
    %v209 = vld [vmem:[%s1 + $0x200] sm:$0xf]
    %v210 = vld [vmem:[%s1 + $0x204] sm:$0xf]
    %v211 = vld [vmem:[%s1 + $0x208] sm:$0xf]
    %v212 = vld [vmem:[%s1 + $0x20c] sm:$0xf]
    %v213 = vld [vmem:[%s1 + $0x210] sm:$0xf]
    %v214 = vld [vmem:[%s1 + $0x214] sm:$0xf]
    %v215 = vld [vmem:[%s1 + $0x218] sm:$0xf]
    %v216 = vld [vmem:[%s1 + $0x21c] sm:$0xf]
    %v217 = vld [vmem:[%s1 + $0x220] sm:$0xf]
    %v218 = vld [vmem:[%s1 + $0x224] sm:$0xf]
    %v219 = vld [vmem:[%s1 + $0x228] sm:$0xf]
    %v220 = vld [vmem:[%s1 + $0x22c] sm:$0xf]
    %v221 = vld [vmem:[%s1 + $0x230] sm:$0xf]
    %v222 = vld [vmem:[%s1 + $0x234] sm:$0xf]
    %v223 = vld [vmem:[%s1 + $0x238] sm:$0xf]
    %v224 = vld [vmem:[%s1 + $0x23c] sm:$0xf]
    %v225 = vld [vmem:[%s1 + $0x240] sm:$0xf]
    %v226 = vld [vmem:[%s1 + $0x244] sm:$0xf]
    %v227 = vld [vmem:[%s1 + $0x248] sm:$0xf]
    %v228 = vld [vmem:[%s1 + $0x24c] sm:$0xf]
    %v229 = vld [vmem:[%s1 + $0x250] sm:$0xf]
    %v230 = vld [vmem:[%s1 + $0x254] sm:$0xf]
    %v231 = vld [vmem:[%s1 + $0x258] sm:$0xf]
    %v232 = vld [vmem:[%s1 + $0x25c] sm:$0xf]
    %v233 = vld [vmem:[%s1 + $0x260] sm:$0xf]
    %v234 = vld [vmem:[%s1 + $0x264] sm:$0xf]
    %v235 = vld [vmem:[%s1 + $0x268] sm:$0xf]
    %v236 = vld [vmem:[%s1 + $0x26c] sm:$0xf]
    %v237 = vld [vmem:[%s1 + $0x270] sm:$0xf]
    %v238 = vld [vmem:[%s1 + $0x274] sm:$0xf]
    %v239 = vld [vmem:[%s1 + $0x278] sm:$0xf]
    %v240 = vld [vmem:[%s1 + $0x27c] sm:$0xf]
    %v241 = vld [vmem:[%s1 + $0x280] sm:$0xf]
    %v242 = vld [vmem:[%s1 + $0x284] sm:$0xf]
    %v243 = vld [vmem:[%s1 + $0x288] sm:$0xf]
    %v244 = vld [vmem:[%s1 + $0x28c] sm:$0xf]
    %v245 = vld [vmem:[%s1 + $0x290] sm:$0xf]
    %v246 = vld [vmem:[%s1 + $0x294] sm:$0xf]
    %v247 = vld [vmem:[%s1 + $0x298] sm:$0xf]
    %v248 = vld [vmem:[%s1 + $0x29c] sm:$0xf]
    %v249 = vld [vmem:[%s1 + $0x2a0] sm:$0xf]
    %v250 = vld [vmem:[%s1 + $0x2a4] sm:$0xf]
    %v251 = vld [vmem:[%s1 + $0x2a8] sm:$0xf]
    %v252 = vld [vmem:[%s1 + $0x2ac] sm:$0xf]
    %v253 = vld [vmem:[%s1 + $0x2b0] sm:$0xf]
    %v254 = vld [vmem:[%s1 + $0x2b4] sm:$0xf]
    %v255 = vld [vmem:[%s1 + $0x2b8] sm:$0xf]
    %v256 = vld [vmem:[%s1 + $0x2bc] sm:$0xf]
    %v257 = vld [vmem:[%s1 + $0x2c0] sm:$0xf]
    %v258 = vld [vmem:[%s1 + $0x2c4] sm:$0xf]
    %v259 = vld [vmem:[%s1 + $0x2c8] sm:$0xf]
    %v260 = vld [vmem:[%s1 + $0x2cc] sm:$0xf]
    %v261 = vld [vmem:[%s1 + $0x2d0] sm:$0xf]
    %v262 = vld [vmem:[%s1 + $0x2d4] sm:$0xf]
    %v263 = vld [vmem:[%s1 + $0x2d8] sm:$0xf]
    %v264 = vld [vmem:[%s1 + $0x2dc] sm:$0xf]
    %v265 = vld [vmem:[%s1 + $0x2e0] sm:$0xf]
    %v266 = vld [vmem:[%s1 + $0x2e4] sm:$0xf]
    %v267 = vld [vmem:[%s1 + $0x2e8] sm:$0xf]
    %v268 = vld [vmem:[%s1 + $0x2ec] sm:$0xf]
    %v269 = vld [vmem:[%s1 + $0x2f0] sm:$0xf]
    %v270 = vld [vmem:[%s1 + $0x2f4] sm:$0xf]
    %v271 = vld [vmem:[%s1 + $0x2f8] sm:$0xf]
    %v272 = vld [vmem:[%s1 + $0x2fc] sm:$0xf]
    %v273 = vld [vmem:[%s1 + $0x300] sm:$0xf]
    %v274 = vld [vmem:[%s1 + $0x304] sm:$0xf]
    %v275 = vld [vmem:[%s1 + $0x308] sm:$0xf]
    %v276 = vld [vmem:[%s1 + $0x30c] sm:$0xf]
    %v277 = vld [vmem:[%s1 + $0x310] sm:$0xf]
    %v278 = vld [vmem:[%s1 + $0x314] sm:$0xf]
    %v279 = vld [vmem:[%s1 + $0x318] sm:$0xf]
    %v280 = vld [vmem:[%s1 + $0x31c] sm:$0xf]
    %v281 = vld [vmem:[%s1 + $0x320] sm:$0xf]
    %v282 = vld [vmem:[%s1 + $0x324] sm:$0xf]
    %v283 = vld [vmem:[%s1 + $0x328] sm:$0xf]
    %v284 = vld [vmem:[%s1 + $0x32c] sm:$0xf]
    %v285 = vld [vmem:[%s1 + $0x330] sm:$0xf]
    %v286 = vld [vmem:[%s1 + $0x334] sm:$0xf]
    %v287 = vld [vmem:[%s1 + $0x338] sm:$0xf]
    %v288 = vld [vmem:[%s1 + $0x33c] sm:$0xf]
    %v289 = vld [vmem:[%s1 + $0x340] sm:$0xf]
    %v290 = vld [vmem:[%s1 + $0x344] sm:$0xf]
    %v291 = vld [vmem:[%s1 + $0x348] sm:$0xf]
    %v292 = vld [vmem:[%s1 + $0x34c] sm:$0xf]
    %v293 = vld [vmem:[%s1 + $0x350] sm:$0xf]
    %v294 = vld [vmem:[%s1 + $0x354] sm:$0xf]
    %v295 = vld [vmem:[%s1 + $0x358] sm:$0xf]
    %v296 = vld [vmem:[%s1 + $0x35c] sm:$0xf]
    %v297 = vld [vmem:[%s1 + $0x360] sm:$0xf]
    %v298 = vld [vmem:[%s1 + $0x364] sm:$0xf]
    %v299 = vld [vmem:[%s1 + $0x368] sm:$0xf]
    %v300 = vld [vmem:[%s1 + $0x36c] sm:$0xf]
    %v301 = vld [vmem:[%s1 + $0x370] sm:$0xf]
    %v302 = vld [vmem:[%s1 + $0x374] sm:$0xf]
    %v303 = vld [vmem:[%s1 + $0x378] sm:$0xf]
    %v304 = vld [vmem:[%s1 + $0x37c] sm:$0xf]
    %v305 = vld [vmem:[%s1 + $0x380] sm:$0xf]
    %v306 = vld [vmem:[%s1 + $0x384] sm:$0xf]
    %v307 = vld [vmem:[%s1 + $0x388] sm:$0xf]
    %v308 = vld [vmem:[%s1 + $0x38c] sm:$0xf]
    %v309 = vld [vmem:[%s1 + $0x390] sm:$0xf]
    %v310 = vld [vmem:[%s1 + $0x394] sm:$0xf]
    %v311 = vld [vmem:[%s1 + $0x398] sm:$0xf]
    %v312 = vld [vmem:[%s1 + $0x39c] sm:$0xf]
    %v313 = vld [vmem:[%s1 + $0x3a0] sm:$0xf]
    %v314 = vld [vmem:[%s1 + $0x3a4] sm:$0xf]
    %v315 = vld [vmem:[%s1 + $0x3a8] sm:$0xf]
    %v316 = vld [vmem:[%s1 + $0x3ac] sm:$0xf]
    %v317 = vld [vmem:[%s1 + $0x3b0] sm:$0xf]
    %v318 = vld [vmem:[%s1 + $0x3b4] sm:$0xf]
    %v319 = vld [vmem:[%s1 + $0x3b8] sm:$0xf]
    %v320 = vld [vmem:[%s1 + $0x3bc] sm:$0xf]
    %v321 = vld [vmem:[%s1 + $0x3c0] sm:$0xf]
    %v322 = vld [vmem:[%s1 + $0x3c4] sm:$0xf]
    %v323 = vld [vmem:[%s1 + $0x3c8] sm:$0xf]
    %v324 = vld [vmem:[%s1 + $0x3cc] sm:$0xf]
    %v325 = vld [vmem:[%s1 + $0x3d0] sm:$0xf]
    %v326 = vld [vmem:[%s1 + $0x3d4] sm:$0xf]
    %v327 = vld [vmem:[%s1 + $0x3d8] sm:$0xf]
    %v328 = vld [vmem:[%s1 + $0x3dc] sm:$0xf]
    %v329 = vld [vmem:[%s1 + $0x3e0] sm:$0xf]
    %v330 = vld [vmem:[%s1 + $0x3e4] sm:$0xf]
    %v331 = vld [vmem:[%s1 + $0x3e8] sm:$0xf]
    %v332 = vld [vmem:[%s1 + $0x3ec] sm:$0xf]
    %v333 = vld [vmem:[%s1 + $0x3f0] sm:$0xf]
    %v334 = vld [vmem:[%s1 + $0x3f4] sm:$0xf]
    %v335 = vld [vmem:[%s1 + $0x3f8] sm:$0xf]
    %v336 = vld [vmem:[%s1 + $0x3fc] sm:$0xf]
    %v337 = vld [vmem:[%s1 + $0x400] sm:$0xf]
    %v338 = vld [vmem:[%s1 + $0x404] sm:$0xf]
    %v339 = vld [vmem:[%s1 + $0x408] sm:$0xf]
    %v340 = vld [vmem:[%s1 + $0x40c] sm:$0xf]
    %v341 = vld [vmem:[%s1 + $0x410] sm:$0xf]
    %v342 = vld [vmem:[%s1 + $0x414] sm:$0xf]
    %v343 = vld [vmem:[%s1 + $0x418] sm:$0xf]
    %v344 = vld [vmem:[%s1 + $0x41c] sm:$0xf]
    %v345 = vld [vmem:[%s1 + $0x420] sm:$0xf]
    %v346 = vld [vmem:[%s1 + $0x424] sm:$0xf]
    %v347 = vld [vmem:[%s1 + $0x428] sm:$0xf]
    %v348 = vld [vmem:[%s1 + $0x42c] sm:$0xf]
    %v349 = vld [vmem:[%s1 + $0x430] sm:$0xf]
    %v350 = vld [vmem:[%s1 + $0x434] sm:$0xf]
    %v351 = vld [vmem:[%s1 + $0x438] sm:$0xf]
    %v352 = vld [vmem:[%s1 + $0x43c] sm:$0xf]
    %v353 = vld [vmem:[%s1 + $0x440] sm:$0xf]
    %v354 = vld [vmem:[%s1 + $0x444] sm:$0xf]
    %v355 = vld [vmem:[%s1 + $0x448] sm:$0xf]
    %v356 = vld [vmem:[%s1 + $0x44c] sm:$0xf]
    %v357 = vld [vmem:[%s1 + $0x450] sm:$0xf]
    %v358 = vld [vmem:[%s1 + $0x454] sm:$0xf]
    %v359 = vld [vmem:[%s1 + $0x458] sm:$0xf]
    %v360 = vld [vmem:[%s1 + $0x45c] sm:$0xf]
    %v361 = vld [vmem:[%s1 + $0x460] sm:$0xf]
    %v362 = vld [vmem:[%s1 + $0x464] sm:$0xf]
    %v363 = vld [vmem:[%s1 + $0x468] sm:$0xf]
    %v364 = vld [vmem:[%s1 + $0x46c] sm:$0xf]
    %v365 = vld [vmem:[%s1 + $0x470] sm:$0xf]
    %v366 = vld [vmem:[%s1 + $0x474] sm:$0xf]
    %v367 = vld [vmem:[%s1 + $0x478] sm:$0xf]
    %v368 = vld [vmem:[%s1 + $0x47c] sm:$0xf]
    %v369 = vld [vmem:[%s1 + $0x480] sm:$0xf]
    %v370 = vld [vmem:[%s1 + $0x484] sm:$0xf]
    %v371 = vld [vmem:[%s1 + $0x488] sm:$0xf]
    %v372 = vld [vmem:[%s1 + $0x48c] sm:$0xf]
    %v373 = vld [vmem:[%s1 + $0x490] sm:$0xf]
    %v374 = vld [vmem:[%s1 + $0x494] sm:$0xf]
    %v375 = vld [vmem:[%s1 + $0x498] sm:$0xf]
    %v376 = vld [vmem:[%s1 + $0x49c] sm:$0xf]
    %v377 = vld [vmem:[%s1 + $0x4a0] sm:$0xf]
    %v378 = vld [vmem:[%s1 + $0x4a4] sm:$0xf]
    %v379 = vld [vmem:[%s1 + $0x4a8] sm:$0xf]
    %v380 = vld [vmem:[%s1 + $0x4ac] sm:$0xf]
    %v381 = vld [vmem:[%s1 + $0x4b0] sm:$0xf]
    %v382 = vld [vmem:[%s1 + $0x4b4] sm:$0xf]
    %v383 = vld [vmem:[%s1 + $0x4b8] sm:$0xf]
    %v384 = vld [vmem:[%s1 + $0x4bc] sm:$0xf]
    %v385 = vld [vmem:[%s1 + $0x4c0] sm:$0xf]
    %v386 = vld [vmem:[%s1 + $0x4c4] sm:$0xf]
    %v387 = vld [vmem:[%s1 + $0x4c8] sm:$0xf]
    %v388 = vld [vmem:[%s1 + $0x4cc] sm:$0xf]
    %v389 = vld [vmem:[%s1 + $0x4d0] sm:$0xf]
    %v390 = vld [vmem:[%s1 + $0x4d4] sm:$0xf]
    %v391 = vld [vmem:[%s1 + $0x4d8] sm:$0xf]
    %v392 = vld [vmem:[%s1 + $0x4dc] sm:$0xf]
    %v393 = vld [vmem:[%s1 + $0x4e0] sm:$0x3]
    %v394 = vld [vmem:[%s2] sm:$0x1]
    %v396 = vlaneseq
    %v397 = vshrl.u32 %v396, 7
    %v398 = vsub.s32 0, %v397
    %v399 = vrot.slane %v394, %v398
    %v714 = vunpack.c.l.b16 %v81
    %v715 = vunpack.c.l.b16 %v82
    %v716 = vunpack.c.l.b16 %v83
    %v717 = vunpack.c.l.b16 %v84
    %v718 = vunpack.c.l.b16 %v85
    %v719 = vunpack.c.l.b16 %v86
    %v720 = vunpack.c.l.b16 %v87
    %v721 = vunpack.c.l.b16 %v88
    %v722 = vunpack.c.l.b16 %v89
    %v723 = vunpack.c.l.b16 %v90
    %v724 = vunpack.c.l.b16 %v91
    %v725 = vunpack.c.l.b16 %v92
    %v726 = vunpack.c.l.b16 %v93
    %v727 = vunpack.c.l.b16 %v94
    %v728 = vunpack.c.l.b16 %v95
    %v729 = vunpack.c.l.b16 %v96
    %v730 = vunpack.c.l.b16 %v97
    %v731 = vunpack.c.l.b16 %v98
    %v732 = vunpack.c.l.b16 %v99
    %v733 = vunpack.c.l.b16 %v100
    %v734 = vunpack.c.l.b16 %v101
    %v735 = vunpack.c.l.b16 %v102
    %v736 = vunpack.c.l.b16 %v103
    %v737 = vunpack.c.l.b16 %v104
    %v738 = vunpack.c.l.b16 %v105
    %v739 = vunpack.c.l.b16 %v106
    %v740 = vunpack.c.l.b16 %v107
    %v741 = vunpack.c.l.b16 %v108
    %v742 = vunpack.c.l.b16 %v109
    %v743 = vunpack.c.l.b16 %v110
    %v744 = vunpack.c.l.b16 %v111
    %v745 = vunpack.c.l.b16 %v112
    %v746 = vunpack.c.l.b16 %v113
    %v747 = vunpack.c.l.b16 %v114
    %v748 = vunpack.c.l.b16 %v115
    %v749 = vunpack.c.l.b16 %v116
    %v750 = vunpack.c.l.b16 %v117
    %v751 = vunpack.c.l.b16 %v118
    %v752 = vunpack.c.l.b16 %v119
    %v753 = vunpack.c.l.b16 %v120
    %v754 = vunpack.c.l.b16 %v121
    %v755 = vunpack.c.l.b16 %v122
    %v756 = vunpack.c.l.b16 %v123
    %v757 = vunpack.c.l.b16 %v124
    %v758 = vunpack.c.l.b16 %v125
    %v759 = vunpack.c.l.b16 %v126
    %v760 = vunpack.c.l.b16 %v127
    %v761 = vunpack.c.l.b16 %v128
    %v762 = vunpack.c.l.b16 %v129
    %v763 = vunpack.c.l.b16 %v130
    %v764 = vunpack.c.l.b16 %v131
    %v765 = vunpack.c.l.b16 %v132
    %v766 = vunpack.c.l.b16 %v133
    %v767 = vunpack.c.l.b16 %v134
    %v768 = vunpack.c.l.b16 %v135
    %v769 = vunpack.c.l.b16 %v136
    %v770 = vunpack.c.l.b16 %v137
    %v771 = vunpack.c.l.b16 %v138
    %v772 = vunpack.c.l.b16 %v139
    %v773 = vunpack.c.l.b16 %v140
    %v774 = vunpack.c.l.b16 %v141
    %v775 = vunpack.c.l.b16 %v142
    %v776 = vunpack.c.l.b16 %v143
    %v777 = vunpack.c.l.b16 %v144
    %v778 = vunpack.c.l.b16 %v145
    %v779 = vunpack.c.l.b16 %v146
    %v780 = vunpack.c.l.b16 %v147
    %v781 = vunpack.c.l.b16 %v148
    %v782 = vunpack.c.l.b16 %v149
    %v783 = vunpack.c.l.b16 %v150
    %v784 = vunpack.c.l.b16 %v151
    %v785 = vunpack.c.l.b16 %v152
    %v786 = vunpack.c.l.b16 %v153
    %v787 = vunpack.c.l.b16 %v154
    %v788 = vunpack.c.l.b16 %v155
    %v789 = vunpack.c.l.b16 %v156
    %v790 = vunpack.c.l.b16 %v157
    %v791 = vunpack.c.l.b16 %v158
    %v792 = vunpack.c.l.b16 %v159
    %v793 = vunpack.c.l.b16 %v160
    %v794 = vunpack.c.l.b16 %v161
    %v795 = vunpack.c.l.b16 %v162
    %v796 = vunpack.c.l.b16 %v163
    %v797 = vunpack.c.l.b16 %v164
    %v798 = vunpack.c.l.b16 %v165
    %v799 = vunpack.c.l.b16 %v166
    %v800 = vunpack.c.l.b16 %v167
    %v801 = vunpack.c.l.b16 %v168
    %v802 = vunpack.c.l.b16 %v169
    %v803 = vunpack.c.l.b16 %v170
    %v804 = vunpack.c.l.b16 %v171
    %v805 = vunpack.c.l.b16 %v172
    %v806 = vunpack.c.l.b16 %v173
    %v807 = vunpack.c.l.b16 %v174
    %v808 = vunpack.c.l.b16 %v175
    %v809 = vunpack.c.l.b16 %v176
    %v810 = vunpack.c.l.b16 %v177
    %v811 = vunpack.c.l.b16 %v178
    %v812 = vunpack.c.l.b16 %v179
    %v813 = vunpack.c.l.b16 %v180
    %v814 = vunpack.c.l.b16 %v181
    %v815 = vunpack.c.l.b16 %v182
    %v816 = vunpack.c.l.b16 %v183
    %v817 = vunpack.c.l.b16 %v184
    %v818 = vunpack.c.l.b16 %v185
    %v819 = vunpack.c.l.b16 %v186
    %v820 = vunpack.c.l.b16 %v187
    %v821 = vunpack.c.l.b16 %v188
    %v822 = vunpack.c.l.b16 %v189
    %v823 = vunpack.c.l.b16 %v190
    %v824 = vunpack.c.l.b16 %v191
    %v825 = vunpack.c.l.b16 %v192
    %v826 = vunpack.c.l.b16 %v193
    %v827 = vunpack.c.l.b16 %v194
    %v828 = vunpack.c.l.b16 %v195
    %v829 = vunpack.c.l.b16 %v196
    %v830 = vunpack.c.l.b16 %v197
    %v831 = vunpack.c.l.b16 %v198
    %v832 = vunpack.c.l.b16 %v199
    %v833 = vunpack.c.l.b16 %v200
    %v834 = vunpack.c.l.b16 %v201
    %v835 = vunpack.c.l.b16 %v202
    %v836 = vunpack.c.l.b16 %v203
    %v837 = vunpack.c.l.b16 %v204
    %v838 = vunpack.c.l.b16 %v205
    %v839 = vunpack.c.l.b16 %v206
    %v840 = vunpack.c.l.b16 %v207
    %v841 = vunpack.c.l.b16 %v208
    %v842 = vunpack.c.l.b16 %v209
    %v843 = vunpack.c.l.b16 %v210
    %v844 = vunpack.c.l.b16 %v211
    %v845 = vunpack.c.l.b16 %v212
    %v846 = vunpack.c.l.b16 %v213
    %v847 = vunpack.c.l.b16 %v214
    %v848 = vunpack.c.l.b16 %v215
    %v849 = vunpack.c.l.b16 %v216
    %v850 = vunpack.c.l.b16 %v217
    %v851 = vunpack.c.l.b16 %v218
    %v852 = vunpack.c.l.b16 %v219
    %v853 = vunpack.c.l.b16 %v220
    %v854 = vunpack.c.l.b16 %v221
    %v855 = vunpack.c.l.b16 %v222
    %v856 = vunpack.c.l.b16 %v223
    %v857 = vunpack.c.l.b16 %v224
    %v858 = vunpack.c.l.b16 %v225
    %v859 = vunpack.c.l.b16 %v226
    %v860 = vunpack.c.l.b16 %v227
    %v861 = vunpack.c.l.b16 %v228
    %v862 = vunpack.c.l.b16 %v229
    %v863 = vunpack.c.l.b16 %v230
    %v864 = vunpack.c.l.b16 %v231
    %v865 = vunpack.c.l.b16 %v232
    %v866 = vunpack.c.l.b16 %v233
    %v867 = vunpack.c.l.b16 %v234
    %v868 = vunpack.c.l.b16 %v235
    %v869 = vunpack.c.l.b16 %v236
    %v870 = vunpack.c.l.b16 %v237
    %v871 = vunpack.c.l.b16 %v238
    %v872 = vunpack.c.l.b16 %v239
    %v873 = vunpack.c.l.b16 %v240
    %v874 = vunpack.c.l.b16 %v241
    %v875 = vunpack.c.l.b16 %v242
    %v876 = vunpack.c.l.b16 %v243
    %v877 = vunpack.c.l.b16 %v244
    %v878 = vunpack.c.l.b16 %v245
    %v879 = vunpack.c.l.b16 %v246
    %v880 = vunpack.c.l.b16 %v247
    %v881 = vunpack.c.l.b16 %v248
    %v882 = vunpack.c.l.b16 %v249
    %v883 = vunpack.c.l.b16 %v250
    %v884 = vunpack.c.l.b16 %v251
    %v885 = vunpack.c.l.b16 %v252
    %v886 = vunpack.c.l.b16 %v253
    %v887 = vunpack.c.l.b16 %v254
    %v888 = vunpack.c.l.b16 %v255
    %v889 = vunpack.c.l.b16 %v256
    %v890 = vunpack.c.l.b16 %v257
    %v891 = vunpack.c.l.b16 %v258
    %v892 = vunpack.c.l.b16 %v259
    %v893 = vunpack.c.l.b16 %v260
    %v894 = vunpack.c.l.b16 %v261
    %v895 = vunpack.c.l.b16 %v262
    %v896 = vunpack.c.l.b16 %v263
    %v897 = vunpack.c.l.b16 %v264
    %v898 = vunpack.c.l.b16 %v265
    %v899 = vunpack.c.l.b16 %v266
    %v900 = vunpack.c.l.b16 %v267
    %v901 = vunpack.c.l.b16 %v268
    %v902 = vunpack.c.l.b16 %v269
    %v903 = vunpack.c.l.b16 %v270
    %v904 = vunpack.c.l.b16 %v271
    %v905 = vunpack.c.l.b16 %v272
    %v906 = vunpack.c.l.b16 %v273
    %v907 = vunpack.c.l.b16 %v274
    %v908 = vunpack.c.l.b16 %v275
    %v909 = vunpack.c.l.b16 %v276
    %v910 = vunpack.c.l.b16 %v277
    %v911 = vunpack.c.l.b16 %v278
    %v912 = vunpack.c.l.b16 %v279
    %v913 = vunpack.c.l.b16 %v280
    %v914 = vunpack.c.l.b16 %v281
    %v915 = vunpack.c.l.b16 %v282
    %v916 = vunpack.c.l.b16 %v283
    %v917 = vunpack.c.l.b16 %v284
    %v918 = vunpack.c.l.b16 %v285
    %v919 = vunpack.c.l.b16 %v286
    %v920 = vunpack.c.l.b16 %v287
    %v921 = vunpack.c.l.b16 %v288
    %v922 = vunpack.c.l.b16 %v289
    %v923 = vunpack.c.l.b16 %v290
    %v924 = vunpack.c.l.b16 %v291
    %v925 = vunpack.c.l.b16 %v292
    %v926 = vunpack.c.l.b16 %v293
    %v927 = vunpack.c.l.b16 %v294
    %v928 = vunpack.c.l.b16 %v295
    %v929 = vunpack.c.l.b16 %v296
    %v930 = vunpack.c.l.b16 %v297
    %v931 = vunpack.c.l.b16 %v298
    %v932 = vunpack.c.l.b16 %v299
    %v933 = vunpack.c.l.b16 %v300
    %v934 = vunpack.c.l.b16 %v301
    %v935 = vunpack.c.l.b16 %v302
    %v936 = vunpack.c.l.b16 %v303
    %v937 = vunpack.c.l.b16 %v304
    %v938 = vunpack.c.l.b16 %v305
    %v939 = vunpack.c.l.b16 %v306
    %v940 = vunpack.c.l.b16 %v307
    %v941 = vunpack.c.l.b16 %v308
    %v942 = vunpack.c.l.b16 %v309
    %v943 = vunpack.c.l.b16 %v310
    %v944 = vunpack.c.l.b16 %v311
    %v945 = vunpack.c.l.b16 %v312
    %v946 = vunpack.c.l.b16 %v313
    %v947 = vunpack.c.l.b16 %v314
    %v948 = vunpack.c.l.b16 %v315
    %v949 = vunpack.c.l.b16 %v316
    %v950 = vunpack.c.l.b16 %v317
    %v951 = vunpack.c.l.b16 %v318
    %v952 = vunpack.c.l.b16 %v319
    %v953 = vunpack.c.l.b16 %v320
    %v954 = vunpack.c.l.b16 %v321
    %v955 = vunpack.c.l.b16 %v322
    %v956 = vunpack.c.l.b16 %v323
    %v957 = vunpack.c.l.b16 %v324
    %v958 = vunpack.c.l.b16 %v325
    %v959 = vunpack.c.l.b16 %v326
    %v960 = vunpack.c.l.b16 %v327
    %v961 = vunpack.c.l.b16 %v328
    %v962 = vunpack.c.l.b16 %v329
    %v963 = vunpack.c.l.b16 %v330
    %v964 = vunpack.c.l.b16 %v331
    %v965 = vunpack.c.l.b16 %v332
    %v966 = vunpack.c.l.b16 %v333
    %v967 = vunpack.c.l.b16 %v334
    %v968 = vunpack.c.l.b16 %v335
    %v969 = vunpack.c.l.b16 %v336
    %v970 = vunpack.c.l.b16 %v337
    %v971 = vunpack.c.l.b16 %v338
    %v972 = vunpack.c.l.b16 %v339
    %v973 = vunpack.c.l.b16 %v340
    %v974 = vunpack.c.l.b16 %v341
    %v975 = vunpack.c.l.b16 %v342
    %v976 = vunpack.c.l.b16 %v343
    %v977 = vunpack.c.l.b16 %v344
    %v978 = vunpack.c.l.b16 %v345
    %v979 = vunpack.c.l.b16 %v346
    %v980 = vunpack.c.l.b16 %v347
    %v981 = vunpack.c.l.b16 %v348
    %v982 = vunpack.c.l.b16 %v349
    %v983 = vunpack.c.l.b16 %v350
    %v984 = vunpack.c.l.b16 %v351
    %v985 = vunpack.c.l.b16 %v352
    %v986 = vunpack.c.l.b16 %v353
    %v987 = vunpack.c.l.b16 %v354
    %v988 = vunpack.c.l.b16 %v355
    %v989 = vunpack.c.l.b16 %v356
    %v990 = vunpack.c.l.b16 %v357
    %v991 = vunpack.c.l.b16 %v358
    %v992 = vunpack.c.l.b16 %v359
    %v993 = vunpack.c.l.b16 %v360
    %v994 = vunpack.c.l.b16 %v361
    %v995 = vunpack.c.l.b16 %v362
    %v996 = vunpack.c.l.b16 %v363
    %v997 = vunpack.c.l.b16 %v364
    %v998 = vunpack.c.l.b16 %v365
    %v999 = vunpack.c.l.b16 %v366
    %v1000 = vunpack.c.l.b16 %v367
    %v1001 = vunpack.c.l.b16 %v368
    %v1002 = vunpack.c.l.b16 %v369
    %v1003 = vunpack.c.l.b16 %v370
    %v1004 = vunpack.c.l.b16 %v371
    %v1005 = vunpack.c.l.b16 %v372
    %v1006 = vunpack.c.l.b16 %v373
    %v1007 = vunpack.c.l.b16 %v374
    %v1008 = vunpack.c.l.b16 %v375
    %v1009 = vunpack.c.l.b16 %v376
    %v1010 = vunpack.c.l.b16 %v377
    %v1011 = vunpack.c.l.b16 %v378
    %v1012 = vunpack.c.l.b16 %v379
    %v1013 = vunpack.c.l.b16 %v380
    %v1014 = vunpack.c.l.b16 %v381
    %v1015 = vunpack.c.l.b16 %v382
    %v1016 = vunpack.c.l.b16 %v383
    %v1017 = vunpack.c.l.b16 %v384
    %v1018 = vunpack.c.l.b16 %v385
    %v1019 = vunpack.c.l.b16 %v386
    %v1020 = vunpack.c.l.b16 %v387
    %v1021 = vunpack.c.l.b16 %v388
    %v1022 = vunpack.c.l.b16 %v389
    %v1023 = vunpack.c.l.b16 %v390
    %v1024 = vunpack.c.l.b16 %v391
    %v1025 = vunpack.c.l.b16 %v392
    %v1026 = vunpack.c.l.b16 %v393
    %v1027 = vpack.c.b16 %v715, %v714
    %v1028 = vpack.c.b16 %v717, %v716
    %v1029 = vpack.c.b16 %v719, %v718
    %v1030 = vpack.c.b16 %v721, %v720
    %v1031 = vpack.c.b16 %v723, %v722
    %v1032 = vpack.c.b16 %v725, %v724
    %v1033 = vpack.c.b16 %v727, %v726
    %v1034 = vpack.c.b16 %v729, %v728
    %v1035 = vpack.c.b16 %v731, %v730
    %v1036 = vpack.c.b16 %v733, %v732
    %v1037 = vpack.c.b16 %v735, %v734
    %v1038 = vpack.c.b16 %v737, %v736
    %v1039 = vpack.c.b16 %v739, %v738
    %v1040 = vpack.c.b16 %v741, %v740
    %v1041 = vpack.c.b16 %v743, %v742
    %v1042 = vpack.c.b16 %v745, %v744
    %v1043 = vpack.c.b16 %v747, %v746
    %v1044 = vpack.c.b16 %v749, %v748
    %v1045 = vpack.c.b16 %v751, %v750
    %v1046 = vpack.c.b16 %v753, %v752
    %v1047 = vpack.c.b16 %v755, %v754
    %v1048 = vpack.c.b16 %v757, %v756
    %v1049 = vpack.c.b16 %v759, %v758
    %v1050 = vpack.c.b16 %v761, %v760
    %v1051 = vpack.c.b16 %v763, %v762
    %v1052 = vpack.c.b16 %v765, %v764
    %v1053 = vpack.c.b16 %v767, %v766
    %v1054 = vpack.c.b16 %v769, %v768
    %v1055 = vpack.c.b16 %v771, %v770
    %v1056 = vpack.c.b16 %v773, %v772
    %v1057 = vpack.c.b16 %v775, %v774
    %v1058 = vpack.c.b16 %v777, %v776
    %v1059 = vpack.c.b16 %v779, %v778
    %v1060 = vpack.c.b16 %v781, %v780
    %v1061 = vpack.c.b16 %v783, %v782
    %v1062 = vpack.c.b16 %v785, %v784
    %v1063 = vpack.c.b16 %v787, %v786
    %v1064 = vpack.c.b16 %v789, %v788
    %v1065 = vpack.c.b16 %v791, %v790
    %v1066 = vpack.c.b16 %v793, %v792
    %v1067 = vpack.c.b16 %v795, %v794
    %v1068 = vpack.c.b16 %v797, %v796
    %v1069 = vpack.c.b16 %v799, %v798
    %v1070 = vpack.c.b16 %v801, %v800
    %v1071 = vpack.c.b16 %v803, %v802
    %v1072 = vpack.c.b16 %v805, %v804
    %v1073 = vpack.c.b16 %v807, %v806
    %v1074 = vpack.c.b16 %v809, %v808
    %v1075 = vpack.c.b16 %v811, %v810
    %v1076 = vpack.c.b16 %v813, %v812
    %v1077 = vpack.c.b16 %v815, %v814
    %v1078 = vpack.c.b16 %v817, %v816
    %v1079 = vpack.c.b16 %v819, %v818
    %v1080 = vpack.c.b16 %v821, %v820
    %v1081 = vpack.c.b16 %v823, %v822
    %v1082 = vpack.c.b16 %v825, %v824
    %v1083 = vpack.c.b16 %v827, %v826
    %v1084 = vpack.c.b16 %v829, %v828
    %v1085 = vpack.c.b16 %v831, %v830
    %v1086 = vpack.c.b16 %v833, %v832
    %v1087 = vpack.c.b16 %v835, %v834
    %v1088 = vpack.c.b16 %v837, %v836
    %v1089 = vpack.c.b16 %v839, %v838
    %v1090 = vpack.c.b16 %v841, %v840
    %v1091 = vpack.c.b16 %v843, %v842
    %v1092 = vpack.c.b16 %v845, %v844
    %v1093 = vpack.c.b16 %v847, %v846
    %v1094 = vpack.c.b16 %v849, %v848
    %v1095 = vpack.c.b16 %v851, %v850
    %v1096 = vpack.c.b16 %v853, %v852
    %v1097 = vpack.c.b16 %v855, %v854
    %v1098 = vpack.c.b16 %v857, %v856
    %v1099 = vpack.c.b16 %v859, %v858
    %v1100 = vpack.c.b16 %v861, %v860
    %v1101 = vpack.c.b16 %v863, %v862
    %v1102 = vpack.c.b16 %v865, %v864
    %v1103 = vpack.c.b16 %v867, %v866
    %v1104 = vpack.c.b16 %v869, %v868
    %v1105 = vpack.c.b16 %v871, %v870
    %v1106 = vpack.c.b16 %v873, %v872
    %v1107 = vpack.c.b16 %v875, %v874
    %v1108 = vpack.c.b16 %v877, %v876
    %v1109 = vpack.c.b16 %v879, %v878
    %v1110 = vpack.c.b16 %v881, %v880
    %v1111 = vpack.c.b16 %v883, %v882
    %v1112 = vpack.c.b16 %v885, %v884
    %v1113 = vpack.c.b16 %v887, %v886
    %v1114 = vpack.c.b16 %v889, %v888
    %v1115 = vpack.c.b16 %v891, %v890
    %v1116 = vpack.c.b16 %v893, %v892
    %v1117 = vpack.c.b16 %v895, %v894
    %v1118 = vpack.c.b16 %v897, %v896
    %v1119 = vpack.c.b16 %v899, %v898
    %v1120 = vpack.c.b16 %v901, %v900
    %v1121 = vpack.c.b16 %v903, %v902
    %v1122 = vpack.c.b16 %v905, %v904
    %v1123 = vpack.c.b16 %v907, %v906
    %v1124 = vpack.c.b16 %v909, %v908
    %v1125 = vpack.c.b16 %v911, %v910
    %v1126 = vpack.c.b16 %v913, %v912
    %v1127 = vpack.c.b16 %v915, %v914
    %v1128 = vpack.c.b16 %v917, %v916
    %v1129 = vpack.c.b16 %v919, %v918
    %v1130 = vpack.c.b16 %v921, %v920
    %v1131 = vpack.c.b16 %v923, %v922
    %v1132 = vpack.c.b16 %v925, %v924
    %v1133 = vpack.c.b16 %v927, %v926
    %v1134 = vpack.c.b16 %v929, %v928
    %v1135 = vpack.c.b16 %v931, %v930
    %v1136 = vpack.c.b16 %v933, %v932
    %v1137 = vpack.c.b16 %v935, %v934
    %v1138 = vpack.c.b16 %v937, %v936
    %v1139 = vpack.c.b16 %v939, %v938
    %v1140 = vpack.c.b16 %v941, %v940
    %v1141 = vpack.c.b16 %v943, %v942
    %v1142 = vpack.c.b16 %v945, %v944
    %v1143 = vpack.c.b16 %v947, %v946
    %v1144 = vpack.c.b16 %v949, %v948
    %v1145 = vpack.c.b16 %v951, %v950
    %v1146 = vpack.c.b16 %v953, %v952
    %v1147 = vpack.c.b16 %v955, %v954
    %v1148 = vpack.c.b16 %v957, %v956
    %v1149 = vpack.c.b16 %v959, %v958
    %v1150 = vpack.c.b16 %v961, %v960
    %v1151 = vpack.c.b16 %v963, %v962
    %v1152 = vpack.c.b16 %v965, %v964
    %v1153 = vpack.c.b16 %v967, %v966
    %v1154 = vpack.c.b16 %v969, %v968
    %v1155 = vpack.c.b16 %v971, %v970
    %v1156 = vpack.c.b16 %v973, %v972
    %v1157 = vpack.c.b16 %v975, %v974
    %v1158 = vpack.c.b16 %v977, %v976
    %v1159 = vpack.c.b16 %v979, %v978
    %v1160 = vpack.c.b16 %v981, %v980
    %v1161 = vpack.c.b16 %v983, %v982
    %v1162 = vpack.c.b16 %v985, %v984
    %v1163 = vpack.c.b16 %v987, %v986
    %v1164 = vpack.c.b16 %v989, %v988
    %v1165 = vpack.c.b16 %v991, %v990
    %v1166 = vpack.c.b16 %v993, %v992
    %v1167 = vpack.c.b16 %v995, %v994
    %v1168 = vpack.c.b16 %v997, %v996
    %v1169 = vpack.c.b16 %v999, %v998
    %v1170 = vpack.c.b16 %v1001, %v1000
    %v1171 = vpack.c.b16 %v1003, %v1002
    %v1172 = vpack.c.b16 %v1005, %v1004
    %v1173 = vpack.c.b16 %v1007, %v1006
    %v1174 = vpack.c.b16 %v1009, %v1008
    %v1175 = vpack.c.b16 %v1011, %v1010
    %v1176 = vpack.c.b16 %v1013, %v1012
    %v1177 = vpack.c.b16 %v1015, %v1014
    %v1178 = vpack.c.b16 %v1017, %v1016
    %v1179 = vpack.c.b16 %v1019, %v1018
    %v1180 = vpack.c.b16 %v1021, %v1020
    %v1181 = vpack.c.b16 %v1023, %v1022
    %v1182 = vpack.c.b16 %v1025, %v1024
    %v1183 = vpack.c.b16 %v1026, %v1026
    %vm1340 = vcmask 556032
    %v1342 = vsel %vm1340, %v80, 0
    %vm1344 = vcmask 1041408
    %v1346 = vsel %vm1344, %v1183, 0
    %1348 = vmatprep.subr.bf16.mxu0 0
    %1349 = vmatpush1.bf16.msra.mxu0 %v1034
    %1350 = vmatprep.subr.bf16.mxu0 0
    %1351 = vmatpush1.bf16.msra.mxu0 %v1033
    %1352 = vmatprep.subr.bf16.mxu0 0
    %1353 = vmatpush1.bf16.msra.mxu0 %v1032
    %1354 = vmatprep.subr.bf16.mxu0 0
    %1355 = vmatpush1.bf16.msra.mxu0 %v1031
    %1356 = vmatprep.subr.bf16.mxu0 0
    %1357 = vmatpush1.bf16.msra.mxu0 %v1030
    %1358 = vmatprep.subr.bf16.mxu0 0
    %1359 = vmatpush1.bf16.msra.mxu0 %v1029
    %1360 = vmatprep.subr.bf16.mxu0 0
    %1361 = vmatpush1.bf16.msra.mxu0 %v1028
    %1362 = vmatprep.subr.bf16.mxu0 0
    %1363 = vmatpush1.bf16.msra.mxu0 %v1027
    %1364 = vmatprep.subr.bf16.mxu0 0
    %1365 = vmatpush2.bf16.msra.mxu0 %v1042
    %1366 = vmatprep.subr.bf16.mxu0 0
    %1367 = vmatpush2.bf16.msra.mxu0 %v1041
    %1368 = vmatprep.subr.bf16.mxu0 0
    %1369 = vmatpush2.bf16.msra.mxu0 %v1040
    %1370 = vmatprep.subr.bf16.mxu0 0
    %1371 = vmatpush2.bf16.msra.mxu0 %v1039
    %1372 = vmatprep.subr.bf16.mxu0 0
    %1373 = vmatpush2.bf16.msra.mxu0 %v1038
    %1374 = vmatprep.subr.bf16.mxu0 0
    %1375 = vmatpush2.bf16.msra.mxu0 %v1037
    %1376 = vmatprep.subr.bf16.mxu0 0
    %1377 = vmatpush2.bf16.msra.mxu0 %v1036
    %1378 = vmatprep.subr.bf16.mxu0 0
    %1379 = vmatpush2.bf16.msra.mxu0 %v1035
    %1380 = vmatprep.mubr.bf16.mxu0 %v62
    %1381 = vmatmul.mubr.bf16.gmra.mxu0 %v61
    %v1382 = vpop.f32.mrf.mxu0
    %v1383 = vadd.f32 %v399, %v1382
    %v1384 = vpop.f32.mrf.mxu0
    %v1385 = vpop.f32.mrf.mxu0
    %v1386 = vadd.f32 %v399, %v1385
    %v1387 = vpop.f32.mrf.mxu0
    %1388 = vdwg.mxu0
    %1389 = vmatprep.subr.bf16.mxu0 0
    %1390 = vmatpush1.bf16.msra.mxu0 %v1050
    %1391 = vmatprep.subr.bf16.mxu0 0
    %1392 = vmatpush1.bf16.msra.mxu0 %v1049
    %1393 = vmatprep.subr.bf16.mxu0 0
    %1394 = vmatpush1.bf16.msra.mxu0 %v1048
    %1395 = vmatprep.subr.bf16.mxu0 0
    %1396 = vmatpush1.bf16.msra.mxu0 %v1047
    %1397 = vmatprep.subr.bf16.mxu0 0
    %1398 = vmatpush1.bf16.msra.mxu0 %v1046
    %1399 = vmatprep.subr.bf16.mxu0 0
    %1400 = vmatpush1.bf16.msra.mxu0 %v1045
    %1401 = vmatprep.subr.bf16.mxu0 0
    %1402 = vmatpush1.bf16.msra.mxu0 %v1044
    %1403 = vmatprep.subr.bf16.mxu0 0
    %1404 = vmatpush1.bf16.msra.mxu0 %v1043
    %1405 = vmatprep.subr.bf16.mxu0 0
    %1406 = vmatpush2.bf16.msra.mxu0 %v1058
    %1407 = vmatprep.subr.bf16.mxu0 0
    %1408 = vmatpush2.bf16.msra.mxu0 %v1057
    %1409 = vmatprep.subr.bf16.mxu0 0
    %1410 = vmatpush2.bf16.msra.mxu0 %v1056
    %1411 = vmatprep.subr.bf16.mxu0 0
    %1412 = vmatpush2.bf16.msra.mxu0 %v1055
    %1413 = vmatprep.subr.bf16.mxu0 0
    %1414 = vmatpush2.bf16.msra.mxu0 %v1054
    %1415 = vmatprep.subr.bf16.mxu0 0
    %1416 = vmatpush2.bf16.msra.mxu0 %v1053
    %1417 = vmatprep.subr.bf16.mxu0 0
    %1418 = vmatpush2.bf16.msra.mxu0 %v1052
    %1419 = vmatprep.subr.bf16.mxu0 0
    %1420 = vmatpush2.bf16.msra.mxu0 %v1051
    %1421 = vmatprep.mubr.bf16.mxu0 %v64
    %1422 = vmatmul.mubr.bf16.gmra.mxu0 %v63
    %v1423 = vpop.f32.mrf.mxu0
    %v1424 = vadd.f32 %v1383, %v1423
    %v1425 = vpop.f32.mrf.mxu0
    %v1426 = vpop.f32.mrf.mxu0
    %v1427 = vadd.f32 %v1386, %v1426
    %v1428 = vpop.f32.mrf.mxu0
    %1429 = vdwg.mxu0
    %1430 = vmatprep.subr.bf16.mxu0 0
    %1431 = vmatpush1.bf16.msra.mxu0 %v1066
    %1432 = vmatprep.subr.bf16.mxu0 0
    %1433 = vmatpush1.bf16.msra.mxu0 %v1065
    %1434 = vmatprep.subr.bf16.mxu0 0
    %1435 = vmatpush1.bf16.msra.mxu0 %v1064
    %1436 = vmatprep.subr.bf16.mxu0 0
    %1437 = vmatpush1.bf16.msra.mxu0 %v1063
    %1438 = vmatprep.subr.bf16.mxu0 0
    %1439 = vmatpush1.bf16.msra.mxu0 %v1062
    %1440 = vmatprep.subr.bf16.mxu0 0
    %1441 = vmatpush1.bf16.msra.mxu0 %v1061
    %1442 = vmatprep.subr.bf16.mxu0 0
    %1443 = vmatpush1.bf16.msra.mxu0 %v1060
    %1444 = vmatprep.subr.bf16.mxu0 0
    %1445 = vmatpush1.bf16.msra.mxu0 %v1059
    %1446 = vmatprep.subr.bf16.mxu0 0
    %1447 = vmatpush2.bf16.msra.mxu0 %v1074
    %1448 = vmatprep.subr.bf16.mxu0 0
    %1449 = vmatpush2.bf16.msra.mxu0 %v1073
    %1450 = vmatprep.subr.bf16.mxu0 0
    %1451 = vmatpush2.bf16.msra.mxu0 %v1072
    %1452 = vmatprep.subr.bf16.mxu0 0
    %1453 = vmatpush2.bf16.msra.mxu0 %v1071
    %1454 = vmatprep.subr.bf16.mxu0 0
    %1455 = vmatpush2.bf16.msra.mxu0 %v1070
    %1456 = vmatprep.subr.bf16.mxu0 0
    %1457 = vmatpush2.bf16.msra.mxu0 %v1069
    %1458 = vmatprep.subr.bf16.mxu0 0
    %1459 = vmatpush2.bf16.msra.mxu0 %v1068
    %1460 = vmatprep.subr.bf16.mxu0 0
    %1461 = vmatpush2.bf16.msra.mxu0 %v1067
    %1462 = vmatprep.mubr.bf16.mxu0 %v66
    %1463 = vmatmul.mubr.bf16.gmra.mxu0 %v65
    %v1464 = vpop.f32.mrf.mxu0
    %v1465 = vadd.f32 %v1424, %v1464
    %v1466 = vpop.f32.mrf.mxu0
    %v1467 = vpop.f32.mrf.mxu0
    %v1468 = vadd.f32 %v1427, %v1467
    %v1469 = vpop.f32.mrf.mxu0
    %1470 = vdwg.mxu0
    %1471 = vmatprep.subr.bf16.mxu0 0
    %1472 = vmatpush1.bf16.msra.mxu0 %v1082
    %1473 = vmatprep.subr.bf16.mxu0 0
    %1474 = vmatpush1.bf16.msra.mxu0 %v1081
    %1475 = vmatprep.subr.bf16.mxu0 0
    %1476 = vmatpush1.bf16.msra.mxu0 %v1080
    %1477 = vmatprep.subr.bf16.mxu0 0
    %1478 = vmatpush1.bf16.msra.mxu0 %v1079
    %1479 = vmatprep.subr.bf16.mxu0 0
    %1480 = vmatpush1.bf16.msra.mxu0 %v1078
    %1481 = vmatprep.subr.bf16.mxu0 0
    %1482 = vmatpush1.bf16.msra.mxu0 %v1077
    %1483 = vmatprep.subr.bf16.mxu0 0
    %1484 = vmatpush1.bf16.msra.mxu0 %v1076
    %1485 = vmatprep.subr.bf16.mxu0 0
    %1486 = vmatpush1.bf16.msra.mxu0 %v1075
    %1487 = vmatprep.subr.bf16.mxu0 0
    %1488 = vmatpush2.bf16.msra.mxu0 %v1090
    %1489 = vmatprep.subr.bf16.mxu0 0
    %1490 = vmatpush2.bf16.msra.mxu0 %v1089
    %1491 = vmatprep.subr.bf16.mxu0 0
    %1492 = vmatpush2.bf16.msra.mxu0 %v1088
    %1493 = vmatprep.subr.bf16.mxu0 0
    %1494 = vmatpush2.bf16.msra.mxu0 %v1087
    %1495 = vmatprep.subr.bf16.mxu0 0
    %1496 = vmatpush2.bf16.msra.mxu0 %v1086
    %1497 = vmatprep.subr.bf16.mxu0 0
    %1498 = vmatpush2.bf16.msra.mxu0 %v1085
    %1499 = vmatprep.subr.bf16.mxu0 0
    %1500 = vmatpush2.bf16.msra.mxu0 %v1084
    %1501 = vmatprep.subr.bf16.mxu0 0
    %1502 = vmatpush2.bf16.msra.mxu0 %v1083
    %1503 = vmatprep.mubr.bf16.mxu0 %v68
    %1504 = vmatmul.mubr.bf16.gmra.mxu0 %v67
    %v1505 = vpop.f32.mrf.mxu0
    %v1506 = vadd.f32 %v1465, %v1505
    %v1507 = vpop.f32.mrf.mxu0
    %v1508 = vpop.f32.mrf.mxu0
    %v1509 = vadd.f32 %v1468, %v1508
    %v1510 = vpop.f32.mrf.mxu0
    %1511 = vdwg.mxu0
    %1512 = vmatprep.subr.bf16.mxu0 0
    %1513 = vmatpush1.bf16.msra.mxu0 %v1098
    %1514 = vmatprep.subr.bf16.mxu0 0
    %1515 = vmatpush1.bf16.msra.mxu0 %v1097
    %1516 = vmatprep.subr.bf16.mxu0 0
    %1517 = vmatpush1.bf16.msra.mxu0 %v1096
    %1518 = vmatprep.subr.bf16.mxu0 0
    %1519 = vmatpush1.bf16.msra.mxu0 %v1095
    %1520 = vmatprep.subr.bf16.mxu0 0
    %1521 = vmatpush1.bf16.msra.mxu0 %v1094
    %1522 = vmatprep.subr.bf16.mxu0 0
    %1523 = vmatpush1.bf16.msra.mxu0 %v1093
    %1524 = vmatprep.subr.bf16.mxu0 0
    %1525 = vmatpush1.bf16.msra.mxu0 %v1092
    %1526 = vmatprep.subr.bf16.mxu0 0
    %1527 = vmatpush1.bf16.msra.mxu0 %v1091
    %1528 = vmatprep.subr.bf16.mxu0 0
    %1529 = vmatpush2.bf16.msra.mxu0 %v1106
    %1530 = vmatprep.subr.bf16.mxu0 0
    %1531 = vmatpush2.bf16.msra.mxu0 %v1105
    %1532 = vmatprep.subr.bf16.mxu0 0
    %1533 = vmatpush2.bf16.msra.mxu0 %v1104
    %1534 = vmatprep.subr.bf16.mxu0 0
    %1535 = vmatpush2.bf16.msra.mxu0 %v1103
    %1536 = vmatprep.subr.bf16.mxu0 0
    %1537 = vmatpush2.bf16.msra.mxu0 %v1102
    %1538 = vmatprep.subr.bf16.mxu0 0
    %1539 = vmatpush2.bf16.msra.mxu0 %v1101
    %1540 = vmatprep.subr.bf16.mxu0 0
    %1541 = vmatpush2.bf16.msra.mxu0 %v1100
    %1542 = vmatprep.subr.bf16.mxu0 0
    %1543 = vmatpush2.bf16.msra.mxu0 %v1099
    %1544 = vmatprep.mubr.bf16.mxu0 %v70
    %1545 = vmatmul.mubr.bf16.gmra.mxu0 %v69
    %v1546 = vpop.f32.mrf.mxu0
    %v1547 = vadd.f32 %v1506, %v1546
    %v1548 = vpop.f32.mrf.mxu0
    %v1549 = vpop.f32.mrf.mxu0
    %v1550 = vadd.f32 %v1509, %v1549
    %v1551 = vpop.f32.mrf.mxu0
    %1552 = vdwg.mxu0
    %1553 = vmatprep.subr.bf16.mxu0 0
    %1554 = vmatpush1.bf16.msra.mxu0 %v1114
    %1555 = vmatprep.subr.bf16.mxu0 0
    %1556 = vmatpush1.bf16.msra.mxu0 %v1113
    %1557 = vmatprep.subr.bf16.mxu0 0
    %1558 = vmatpush1.bf16.msra.mxu0 %v1112
    %1559 = vmatprep.subr.bf16.mxu0 0
    %1560 = vmatpush1.bf16.msra.mxu0 %v1111
    %1561 = vmatprep.subr.bf16.mxu0 0
    %1562 = vmatpush1.bf16.msra.mxu0 %v1110
    %1563 = vmatprep.subr.bf16.mxu0 0
    %1564 = vmatpush1.bf16.msra.mxu0 %v1109
    %1565 = vmatprep.subr.bf16.mxu0 0
    %1566 = vmatpush1.bf16.msra.mxu0 %v1108
    %1567 = vmatprep.subr.bf16.mxu0 0
    %1568 = vmatpush1.bf16.msra.mxu0 %v1107
    %1569 = vmatprep.subr.bf16.mxu0 0
    %1570 = vmatpush2.bf16.msra.mxu0 %v1122
    %1571 = vmatprep.subr.bf16.mxu0 0
    %1572 = vmatpush2.bf16.msra.mxu0 %v1121
    %1573 = vmatprep.subr.bf16.mxu0 0
    %1574 = vmatpush2.bf16.msra.mxu0 %v1120
    %1575 = vmatprep.subr.bf16.mxu0 0
    %1576 = vmatpush2.bf16.msra.mxu0 %v1119
    %1577 = vmatprep.subr.bf16.mxu0 0
    %1578 = vmatpush2.bf16.msra.mxu0 %v1118
    %1579 = vmatprep.subr.bf16.mxu0 0
    %1580 = vmatpush2.bf16.msra.mxu0 %v1117
    %1581 = vmatprep.subr.bf16.mxu0 0
    %1582 = vmatpush2.bf16.msra.mxu0 %v1116
    %1583 = vmatprep.subr.bf16.mxu0 0
    %1584 = vmatpush2.bf16.msra.mxu0 %v1115
    %1585 = vmatprep.mubr.bf16.mxu0 %v72
    %1586 = vmatmul.mubr.bf16.gmra.mxu0 %v71
    %v1587 = vpop.f32.mrf.mxu0
    %v1588 = vadd.f32 %v1547, %v1587
    %v1589 = vpop.f32.mrf.mxu0
    %v1590 = vpop.f32.mrf.mxu0
    %v1591 = vadd.f32 %v1550, %v1590
    %v1592 = vpop.f32.mrf.mxu0
    %1593 = vdwg.mxu0
    %1594 = vmatprep.subr.bf16.mxu0 0
    %1595 = vmatpush1.bf16.msra.mxu0 %v1130
    %1596 = vmatprep.subr.bf16.mxu0 0
    %1597 = vmatpush1.bf16.msra.mxu0 %v1129
    %1598 = vmatprep.subr.bf16.mxu0 0
    %1599 = vmatpush1.bf16.msra.mxu0 %v1128
    %1600 = vmatprep.subr.bf16.mxu0 0
    %1601 = vmatpush1.bf16.msra.mxu0 %v1127
    %1602 = vmatprep.subr.bf16.mxu0 0
    %1603 = vmatpush1.bf16.msra.mxu0 %v1126
    %1604 = vmatprep.subr.bf16.mxu0 0
    %1605 = vmatpush1.bf16.msra.mxu0 %v1125
    %1606 = vmatprep.subr.bf16.mxu0 0
    %1607 = vmatpush1.bf16.msra.mxu0 %v1124
    %1608 = vmatprep.subr.bf16.mxu0 0
    %1609 = vmatpush1.bf16.msra.mxu0 %v1123
    %1610 = vmatprep.subr.bf16.mxu0 0
    %1611 = vmatpush2.bf16.msra.mxu0 %v1138
    %1612 = vmatprep.subr.bf16.mxu0 0
    %1613 = vmatpush2.bf16.msra.mxu0 %v1137
    %1614 = vmatprep.subr.bf16.mxu0 0
    %1615 = vmatpush2.bf16.msra.mxu0 %v1136
    %1616 = vmatprep.subr.bf16.mxu0 0
    %1617 = vmatpush2.bf16.msra.mxu0 %v1135
    %1618 = vmatprep.subr.bf16.mxu0 0
    %1619 = vmatpush2.bf16.msra.mxu0 %v1134
    %1620 = vmatprep.subr.bf16.mxu0 0
    %1621 = vmatpush2.bf16.msra.mxu0 %v1133
    %1622 = vmatprep.subr.bf16.mxu0 0
    %1623 = vmatpush2.bf16.msra.mxu0 %v1132
    %1624 = vmatprep.subr.bf16.mxu0 0
    %1625 = vmatpush2.bf16.msra.mxu0 %v1131
    %1626 = vmatprep.mubr.bf16.mxu0 %v74
    %1627 = vmatmul.mubr.bf16.gmra.mxu0 %v73
    %v1628 = vpop.f32.mrf.mxu0
    %v1629 = vadd.f32 %v1588, %v1628
    %v1630 = vpop.f32.mrf.mxu0
    %v1631 = vpop.f32.mrf.mxu0
    %v1632 = vadd.f32 %v1591, %v1631
    %v1633 = vpop.f32.mrf.mxu0
    %1634 = vdwg.mxu0
    %1635 = vmatprep.subr.bf16.mxu0 0
    %1636 = vmatpush1.bf16.msra.mxu0 %v1146
    %1637 = vmatprep.subr.bf16.mxu0 0
    %1638 = vmatpush1.bf16.msra.mxu0 %v1145
    %1639 = vmatprep.subr.bf16.mxu0 0
    %1640 = vmatpush1.bf16.msra.mxu0 %v1144
    %1641 = vmatprep.subr.bf16.mxu0 0
    %1642 = vmatpush1.bf16.msra.mxu0 %v1143
    %1643 = vmatprep.subr.bf16.mxu0 0
    %1644 = vmatpush1.bf16.msra.mxu0 %v1142
    %1645 = vmatprep.subr.bf16.mxu0 0
    %1646 = vmatpush1.bf16.msra.mxu0 %v1141
    %1647 = vmatprep.subr.bf16.mxu0 0
    %1648 = vmatpush1.bf16.msra.mxu0 %v1140
    %1649 = vmatprep.subr.bf16.mxu0 0
    %1650 = vmatpush1.bf16.msra.mxu0 %v1139
    %1651 = vmatprep.subr.bf16.mxu0 0
    %1652 = vmatpush2.bf16.msra.mxu0 %v1154
    %1653 = vmatprep.subr.bf16.mxu0 0
    %1654 = vmatpush2.bf16.msra.mxu0 %v1153
    %1655 = vmatprep.subr.bf16.mxu0 0
    %1656 = vmatpush2.bf16.msra.mxu0 %v1152
    %1657 = vmatprep.subr.bf16.mxu0 0
    %1658 = vmatpush2.bf16.msra.mxu0 %v1151
    %1659 = vmatprep.subr.bf16.mxu0 0
    %1660 = vmatpush2.bf16.msra.mxu0 %v1150
    %1661 = vmatprep.subr.bf16.mxu0 0
    %1662 = vmatpush2.bf16.msra.mxu0 %v1149
    %1663 = vmatprep.subr.bf16.mxu0 0
    %1664 = vmatpush2.bf16.msra.mxu0 %v1148
    %1665 = vmatprep.subr.bf16.mxu0 0
    %1666 = vmatpush2.bf16.msra.mxu0 %v1147
    %1667 = vmatprep.mubr.bf16.mxu0 %v76
    %1668 = vmatmul.mubr.bf16.gmra.mxu0 %v75
    %v1669 = vpop.f32.mrf.mxu0
    %v1670 = vadd.f32 %v1629, %v1669
    %v1671 = vpop.f32.mrf.mxu0
    %v1672 = vpop.f32.mrf.mxu0
    %v1673 = vadd.f32 %v1632, %v1672
    %v1674 = vpop.f32.mrf.mxu0
    %1675 = vdwg.mxu0
    %1676 = vmatprep.subr.bf16.mxu0 0
    %1677 = vmatpush1.bf16.msra.mxu0 %v1162
    %1678 = vmatprep.subr.bf16.mxu0 0
    %1679 = vmatpush1.bf16.msra.mxu0 %v1161
    %1680 = vmatprep.subr.bf16.mxu0 0
    %1681 = vmatpush1.bf16.msra.mxu0 %v1160
    %1682 = vmatprep.subr.bf16.mxu0 0
    %1683 = vmatpush1.bf16.msra.mxu0 %v1159
    %1684 = vmatprep.subr.bf16.mxu0 0
    %1685 = vmatpush1.bf16.msra.mxu0 %v1158
    %1686 = vmatprep.subr.bf16.mxu0 0
    %1687 = vmatpush1.bf16.msra.mxu0 %v1157
    %1688 = vmatprep.subr.bf16.mxu0 0
    %1689 = vmatpush1.bf16.msra.mxu0 %v1156
    %1690 = vmatprep.subr.bf16.mxu0 0
    %1691 = vmatpush1.bf16.msra.mxu0 %v1155
    %1692 = vmatprep.subr.bf16.mxu0 0
    %1693 = vmatpush2.bf16.msra.mxu0 %v1170
    %1694 = vmatprep.subr.bf16.mxu0 0
    %1695 = vmatpush2.bf16.msra.mxu0 %v1169
    %1696 = vmatprep.subr.bf16.mxu0 0
    %1697 = vmatpush2.bf16.msra.mxu0 %v1168
    %1698 = vmatprep.subr.bf16.mxu0 0
    %1699 = vmatpush2.bf16.msra.mxu0 %v1167
    %1700 = vmatprep.subr.bf16.mxu0 0
    %1701 = vmatpush2.bf16.msra.mxu0 %v1166
    %1702 = vmatprep.subr.bf16.mxu0 0
    %1703 = vmatpush2.bf16.msra.mxu0 %v1165
    %1704 = vmatprep.subr.bf16.mxu0 0
    %1705 = vmatpush2.bf16.msra.mxu0 %v1164
    %1706 = vmatprep.subr.bf16.mxu0 0
    %1707 = vmatpush2.bf16.msra.mxu0 %v1163
    %1708 = vmatprep.mubr.bf16.mxu0 %v78
    %1709 = vmatmul.mubr.bf16.gmra.mxu0 %v77
    %v1710 = vpop.f32.mrf.mxu0
    %v1711 = vadd.f32 %v1670, %v1710
    %v1712 = vpop.f32.mrf.mxu0
    %v1713 = vpop.f32.mrf.mxu0
    %v1714 = vadd.f32 %v1673, %v1713
    %v1715 = vpop.f32.mrf.mxu0
    %1716 = vdwg.mxu0
    %1717 = vmatprep.subr.bf16.mxu0 0
    %1718 = vmatpush1.bf16.msra.mxu0 %v1178
    %1719 = vmatprep.subr.bf16.mxu0 0
    %1720 = vmatpush1.bf16.msra.mxu0 %v1177
    %1721 = vmatprep.subr.bf16.mxu0 0
    %1722 = vmatpush1.bf16.msra.mxu0 %v1176
    %1723 = vmatprep.subr.bf16.mxu0 0
    %1724 = vmatpush1.bf16.msra.mxu0 %v1175
    %1725 = vmatprep.subr.bf16.mxu0 0
    %1726 = vmatpush1.bf16.msra.mxu0 %v1174
    %1727 = vmatprep.subr.bf16.mxu0 0
    %1728 = vmatpush1.bf16.msra.mxu0 %v1173
    %1729 = vmatprep.subr.bf16.mxu0 0
    %1730 = vmatpush1.bf16.msra.mxu0 %v1172
    %1731 = vmatprep.subr.bf16.mxu0 0
    %1732 = vmatpush1.bf16.msra.mxu0 %v1171
    %1733 = vmatprep.subr.bf16.mxu0 0
    %1734 = vmatpush2.bf16.msra.mxu0 0
    %1735 = vmatprep.subr.bf16.mxu0 0
    %1736 = vmatpush2.bf16.msra.mxu0 0
    %1737 = vmatprep.subr.bf16.mxu0 0
    %1738 = vmatpush2.bf16.msra.mxu0 0
    %1739 = vmatprep.subr.bf16.mxu0 0
    %1740 = vmatpush2.bf16.msra.mxu0 %v1346
    %1741 = vmatprep.subr.bf16.mxu0 0
    %1742 = vmatpush2.bf16.msra.mxu0 %v1182
    %1743 = vmatprep.subr.bf16.mxu0 0
    %1744 = vmatpush2.bf16.msra.mxu0 %v1181
    %1745 = vmatprep.subr.bf16.mxu0 0
    %1746 = vmatpush2.bf16.msra.mxu0 %v1180
    %1747 = vmatprep.subr.bf16.mxu0 0
    %1748 = vmatpush2.bf16.msra.mxu0 %v1179
    %1749 = vmatprep.mubr.bf16.mxu0 %v1342
    %1750 = vmatmul.mubr.bf16.gmra.mxu0 %v79
    %v1751 = vpop.f32.mrf.mxu0
    %v1752 = vadd.f32 %v1711, %v1751
    %v1753 = vpop.f32.mrf.mxu0
    %v1754 = vpop.f32.mrf.mxu0
    %v1755 = vadd.f32 %v1714, %v1754
    %v1756 = vpop.f32.mrf.mxu0
    %1757 = vdwg.mxu0
    %v1758 = vmax.f32 %v1752, 0.0
    %v1759 = vmax.f32 %v1755, 0.0
    %v1760 = vld [vmem:[%s3] sm:$0xff]
    %v1761 = vld [vmem:[%s3 + $0x8] sm:$0xff]
    %v1762 = vld [vmem:[%s3 + $0x10] sm:$0xff]
    %v1763 = vld [vmem:[%s3 + $0x18] sm:$0xff]
    %v1764 = vld [vmem:[%s3 + $0x20] sm:$0xff]
    %v1765 = vld [vmem:[%s3 + $0x28] sm:$0xff]
    %v1766 = vld [vmem:[%s3 + $0x30] sm:$0xff]
    %v1767 = vld [vmem:[%s3 + $0x38] sm:$0xff]
    %v1768 = vld [vmem:[%s4] sm:$0x1]
    %v1770 = vlaneseq
    %v1771 = vshrl.u32 %v1770, 7
    %v1772 = vsub.s32 0, %v1771
    %v1773 = vrot.slane %v1768, %v1772
    %vm1775 = vcmask 523264
    %v1777 = vsel %vm1775, %v1758, 0
    %v1780 = vsel %vm1775, %v1759, 0
    %1782 = vmatprep.subr.mxu0 0.0
    %1783 = vmatpush1.msra.mxu0 0.0
    %1784 = vmatprep.subr.mxu0 0.0
    %1785 = vmatpush1.msra.mxu0 0.0
    %1786 = vmatprep.subr.mxu0 0.0
    %1787 = vmatpush1.msra.mxu0 0.0
    %1788 = vmatprep.subr.mxu0 0.0
    %1789 = vmatpush1.msra.mxu0 0.0
    %1790 = vmatprep.subr.mxu0 0.0
    %1791 = vmatpush1.msra.mxu0 0.0
    %1792 = vmatprep.subr.mxu0 0.0
    %1793 = vmatpush1.msra.mxu0 0.0
    %1794 = vmatprep.subr.mxu0 0.0
    %1795 = vmatpush1.msra.mxu0 0.0
    %1796 = vmatprep.subr.mxu0 0.0
    %1797 = vmatpush1.msra.mxu0 0.0
    %1798 = vmatprep.subr.mxu0 0.0
    %1799 = vmatpush1.msra.mxu0 %v1767
    %1800 = vmatprep.subr.mxu0 0.0
    %1801 = vmatpush1.msra.mxu0 %v1766
    %1802 = vmatprep.subr.mxu0 0.0
    %1803 = vmatpush1.msra.mxu0 %v1765
    %1804 = vmatprep.subr.mxu0 0.0
    %1805 = vmatpush1.msra.mxu0 %v1764
    %1806 = vmatprep.subr.mxu0 0.0
    %1807 = vmatpush1.msra.mxu0 %v1763
    %1808 = vmatprep.subr.mxu0 0.0
    %1809 = vmatpush1.msra.mxu0 %v1762
    %1810 = vmatprep.subr.mxu0 0.0
    %1811 = vmatpush1.msra.mxu0 %v1761
    %1812 = vmatprep.subr.mxu0 0.0
    %1813 = vmatpush1.msra.mxu0 %v1760
    %1814 = vmatprep.subr.mxu0 0.0
    %1815 = vmatpush2.msra.mxu0 0.0
    %1816 = vmatprep.subr.mxu0 0.0
    %1817 = vmatpush2.msra.mxu0 0.0
    %1818 = vmatprep.subr.mxu0 0.0
    %1819 = vmatpush2.msra.mxu0 0.0
    %1820 = vmatprep.subr.mxu0 0.0
    %1821 = vmatpush2.msra.mxu0 0.0
    %1822 = vmatprep.subr.mxu0 0.0
    %1823 = vmatpush2.msra.mxu0 0.0
    %1824 = vmatprep.subr.mxu0 0.0
    %1825 = vmatpush2.msra.mxu0 0.0
    %1826 = vmatprep.subr.mxu0 0.0
    %1827 = vmatpush2.msra.mxu0 0.0
    %1828 = vmatprep.subr.mxu0 0.0
    %1829 = vmatpush2.msra.mxu0 0.0
    %1830 = vmatprep.subr.mxu0 0.0
    %1831 = vmatpush2.msra.mxu0 0.0
    %1832 = vmatprep.subr.mxu0 0.0
    %1833 = vmatpush2.msra.mxu0 0.0
    %1834 = vmatprep.subr.mxu0 0.0
    %1835 = vmatpush2.msra.mxu0 0.0
    %1836 = vmatprep.subr.mxu0 0.0
    %1837 = vmatpush2.msra.mxu0 0.0
    %1838 = vmatprep.subr.mxu0 0.0
    %1839 = vmatpush2.msra.mxu0 0.0
    %1840 = vmatprep.subr.mxu0 0.0
    %1841 = vmatpush2.msra.mxu0 0.0
    %1842 = vmatprep.subr.mxu0 0.0
    %1843 = vmatpush2.msra.mxu0 0.0
    %1844 = vmatprep.subr.mxu0 0.0
    %1845 = vmatpush2.msra.mxu0 0.0
    %1846 = vmatprep.mubr.f32.mxu0 0.0
    %1847 = vmatmul.mubr.f32.gmra.mxu0 %v1777
    %v1848 = vpop.f32.mrf.mxu0
    %v1849 = vadd.f32 %v1773, %v1848
    %v1850 = vpop.f32.mrf.mxu0
    %1851 = vmatprep.mubr.f32.mxu0 0.0
    %1852 = vmatmul.mubr.f32.gmra.mxu0 %v1780
    %v1853 = vpop.f32.mrf.mxu0
    %v1854 = vadd.f32 %v1773, %v1853
    %v1855 = vpop.f32.mrf.mxu0
    %1856 = vdwg.mxu0
    %vm1857 = vcmask 64512
    %1858 = vst.msk [vmem:[#allocation2] sm:$0xff] %vm1857, %v1849
    %1859 = vst.msk [vmem:[#allocation2 + $0x8] sm:$0xff] %vm1857, %v1854
    // Predicated region
    $region22: #{policy_net_forward.1} parent=1 // pred_check
      _
    $region23: #{policy_net_forward.1} parent=1 // pred_check_branch
      %1861 = sbr.rel (0) target = $region25
    $region24: #{policy_net_forward.1} parent=1 // pred_region
      // Predicated region
      $region26: #{policy_net_forward.1} parent=24 // pred_check
        _
      $region27: #{policy_net_forward.1} parent=24 // pred_check_branch
        %1863 = sbr.rel (0) target = $region29
      $region28: #{policy_net_forward.1} parent=24 // pred_region
        // Predicated region
        $region30: #{policy_net_forward.1} parent=28 // pred_check
          _
        $region31: #{policy_net_forward.1} parent=28 // pred_check_branch
          %1865 = sbr.rel (0) target = $region33
        $region32: #{policy_net_forward.1} parent=28 // pred_region
          // Predicated region
          $region45: #{policy_net_forward.1} parent=32 // pred_check
            _
          $region46: #{policy_net_forward.1} parent=32 // pred_check_branch
            %1881 = sbr.rel (0) target = $region48
          $region47: #{policy_net_forward.1} parent=32 // pred_region
            loop: start=0, step=1, limit=1
            $region49: #{policy_net_forward.1} parent=47 // loop_pre_header
              _
            $region50: #{policy_net_forward.1} parent=47 // loop_header
              %s1883 = sphi 0, %s1887
              %p1884 = scmp.ge.s32.totalorder %s1883, 1
              %s1888 = sphi [#allocation2], [#allocation2]
              %s1889 = sphi %s5, %s5
            $region51: #{policy_net_forward.1} parent=47 // loop_header_branch
              %1886 = sbr.rel (%p1884) target = $region55
            $region52: #{policy_net_forward.1} parent=47 // loop_body
              %v1890 = vld [vmem:[%s1888] sm:$0xff]
              %1891 = vst [vmem:[%s1889] sm:$0xff] %v1890
            $region53: #{policy_net_forward.1} parent=47 // loop_footer
              %s1887 = sadd.s32 1, %s1883
            $region54: #{policy_net_forward.1} parent=47 // loop_footer_branch
              %1882 = sbr.rel target = $region50
            $region55: #{policy_net_forward.1} parent=47 // loop_exit
              _
          $region48: #{policy_net_forward.1} parent=32 // pred_fallthru
            _
          // Predicated region
          $region56: #{policy_net_forward.1} parent=32 // pred_check
            _
          $region57: #{policy_net_forward.1} parent=32 // pred_check_branch
            %1893 = sbr.rel target = $region59
          $region58: #{policy_net_forward.1} parent=32 // pred_region
            _
          $region59: #{policy_net_forward.1} parent=32 // pred_fallthru
            _
        $region33: #{policy_net_forward.1} parent=28 // pred_fallthru
          _
        // Predicated region
        $region34: #{policy_net_forward.1} parent=28 // pred_check
          _
        $region35: #{policy_net_forward.1} parent=28 // pred_check_branch
          %1867 = sbr.rel target = $region37
        $region36: #{policy_net_forward.1} parent=28 // pred_region
          %s1869 = ssub.s32 256, 1
          loop: start=0, step=1, limit=1
          $region38: #{policy_net_forward.1} parent=36 // loop_pre_header
            _
          $region39: #{policy_net_forward.1} parent=36 // loop_header
            %s1871 = sphi 0, %s1875
            %p1872 = scmp.ge.s32.totalorder %s1871, 1
            %s1876 = sphi [#allocation2], [#allocation2]
            %s1877 = sphi %s5, %s5
          $region40: #{policy_net_forward.1} parent=36 // loop_header_branch
            %1874 = sbr.rel (%p1872) target = $region44
          $region41: #{policy_net_forward.1} parent=36 // loop_body
            %v1878 = vld [vmem:[%s1876] sm:%s1869]
            %1879 = vst [vmem:[%s1877] sm:%s1869] %v1878
          $region42: #{policy_net_forward.1} parent=36 // loop_footer
            %s1875 = sadd.s32 1, %s1871
          $region43: #{policy_net_forward.1} parent=36 // loop_footer_branch
            %1870 = sbr.rel target = $region39
          $region44: #{policy_net_forward.1} parent=36 // loop_exit
            _
        $region37: #{policy_net_forward.1} parent=28 // pred_fallthru
          _
      $region29: #{policy_net_forward.1} parent=24 // pred_fallthru
        _
      %1894 = vnop
    $region25: #{policy_net_forward.1} parent=1 // pred_fallthru
      _
    // Predicated region
    $region60: #{policy_net_forward.1} parent=1 // pred_check
      _
    $region61: #{policy_net_forward.1} parent=1 // pred_check_branch
      %1896 = sbr.rel (0) target = $region63
    $region62: #{policy_net_forward.1} parent=1 // pred_region
      _
    $region63: #{policy_net_forward.1} parent=1 // pred_fallthru
      _

</llo_original>
